<compile_context>
chip_gen: v7x
topology: tpu7x:2x2x1
jax: 0.10.0
libtpu: 0.0.40
codegen_flags: <defaults>
</compile_context>

<pallas_src>
import functools

import jax
import jax.numpy as jnp
import numpy as np
from jax import lax
from jax.experimental import pallas as pl
from jax.experimental.pallas import tpu as pltpu


def _cross_attn_kernel(x_ref, enc_ref,
                       wq_ref, bq_ref, wk_ref, bk_ref, wv_ref, bv_ref,
                       wo_ref, bo_ref,
                       out_ref, k_out_ref, v_out_ref,
                       ctx_ref,
                       *, num_heads, head_size):
    """One grid step == one batch element."""
    f32 = jnp.float32
    cdt = wq_ref.dtype                 # compute dtype (e.g. bf16)

    # Cast activations to the MXU compute dtype in-kernel (cheap VPU work,
    # avoids an extra HBM pass in the wrapper).
    x = x_ref[0].astype(cdt)           # (Sd, Hdec)
    enc = enc_ref[0].astype(cdt)       # (Se, Henc)

    # Projections: K = Hdec / Henc contractions (the MXU-filling matmuls).
    # Weights are pre-transposed; the 1/sqrt(head_size) attention scale is
    # pre-folded into wq/bq at param-prep time.  f32 accumulation, f32 bias.
    q = jnp.dot(x, wq_ref[...], preferred_element_type=f32) + bq_ref[...]     # (Sd, hd)
    k = jnp.dot(enc, wk_ref[...], preferred_element_type=f32) + bk_ref[...]   # (Se, hd)
    v = jnp.dot(enc, wv_ref[...], preferred_element_type=f32) + bv_ref[...]   # (Se, hd)

    # Attention cache (== AttentionCache(k, v) in the PyTorch module).
    # NOTE: the scale folded into wq does NOT touch k/v, so the cache matches
    # the reference kv_proj output (up to cache dtype).
    k_out_ref[0] = k.astype(k_out_ref.dtype)
    v_out_ref[0] = v.astype(v_out_ref.dtype)

    q_c = q.astype(cdt)
    k_c = k.astype(cdt)
    v_c = v.astype(cdt)

    # Contract the last dims of both operands (q_h . k_h^T) -> no transpose.
    dn_qkT = (((1,), (1,)), ((), ()))

    # Per-head attention (num_heads is small & static).  Each head's context
    # goes straight into the (Sd, hd) VMEM scratch -> no loop-carried f32
    # accumulator, and the output projection below is a single K=hd matmul.
    for h in range(num_heads):
        lo = h * head_size
        hi = lo + head_size
        qh = q_c[:, lo:hi]             # (Sd, D)
        kh = k_c[:, lo:hi]             # (Se, D)
        vh = v_c[:, lo:hi]             # (Se, D)

        s = lax.dot_general(qh, kh, dn_qkT, preferred_element_type=f32)   # (Sd, Se)
        # softmax over the key axis (masked=False -> no causal mask), f32 math.
        s = s - jnp.max(s, axis=-1, keepdims=True)
        p = jnp.exp(s)
        p = p * pl.reciprocal(jnp.sum(p, axis=-1, keepdims=True), approx=True)

        oh = jnp.dot(p.astype(cdt), vh, preferred_element_type=f32)       # (Sd, D)
        ctx_ref[:, lo:hi] = oh.astype(cdt)

    # Single fused output projection: (Sd, hd) @ (hd, Hdec), K = hd.
    out = jnp.dot(ctx_ref[...], wo_ref[...], preferred_element_type=f32) + bo_ref[...]
    out_ref[0] = out.astype(out_ref.dtype)
    # TODO(synk): attn_dropout / resid_dropout are identity in eval mode; no RNG applied.


def prepare_params(params, *, num_heads, head_size, compute_dtype=jnp.bfloat16):
    """One-time parameter prep (hoisted OUT of the per-call hot path).

    Transposes weights, splits the fused kv projection so K/V stay
    lane-contiguous, folds the attention scale into the q projection, and
    casts weights to the MXU compute dtype (biases stay f32).
    """
    hd = num_heads * head_size
    scale = 1.0 / (head_size ** 0.5)
    return {
        "wq_t": (params["wq"].T * scale).astype(compute_dtype),   # (Hdec, hd)
        "bq":   (params["bq"] * scale).astype(jnp.float32),       # (1, hd)
        "wk_t": params["wkv"][:hd, :].T.astype(compute_dtype),    # (Henc, hd)
        "bk":   params["bkv"][:, :hd].astype(jnp.float32),        # (1, hd)
        "wv_t": params["wkv"][hd:, :].T.astype(compute_dtype),    # (Henc, hd)
        "bv":   params["bkv"][:, hd:].astype(jnp.float32),        # (1, hd)
        "wo_t": params["wo"].T.astype(compute_dtype),             # (hd, Hdec)
        "bo":   params["bo"].astype(jnp.float32),                 # (1, Hdec)
    }


def cross_attention_layer(x, encoder_outputs, prepared, *, num_heads, head_size,
                          compute_dtype=jnp.bfloat16, cache_dtype=None):
    """Pallas wrapper.  Returns (out, (k_cache, v_cache))."""
    if cache_dtype is None:
        cache_dtype = compute_dtype
    B, Sd, Hdec = x.shape
    _, Se, Henc = encoder_outputs.shape
    hd = num_heads * head_size

    kernel = functools.partial(_cross_attn_kernel,
                               num_heads=num_heads, head_size=head_size)

    def full_spec(arr):
        n = arr.ndim
        return pl.BlockSpec(arr.shape, lambda b, n=n: (0,) * n)

    out, k_cache, v_cache = pl.pallas_call(
        kernel,
        out_shape=(
            jax.ShapeDtypeStruct((B, Sd, Hdec), x.dtype),
            jax.ShapeDtypeStruct((B, Se, hd), cache_dtype),
            jax.ShapeDtypeStruct((B, Se, hd), cache_dtype),
        ),
        grid_spec=pltpu.PrefetchScalarGridSpec(
            num_scalar_prefetch=0,
            grid=(B,),
            in_specs=[
                pl.BlockSpec((1, Sd, Hdec), lambda b: (b, 0, 0)),   # x (f32)
                pl.BlockSpec((1, Se, Henc), lambda b: (b, 0, 0)),   # encoder_outputs (f32)
                full_spec(prepared["wq_t"]), full_spec(prepared["bq"]),
                full_spec(prepared["wk_t"]), full_spec(prepared["bk"]),
                full_spec(prepared["wv_t"]), full_spec(prepared["bv"]),
                full_spec(prepared["wo_t"]), full_spec(prepared["bo"]),
            ],
            out_specs=[
                pl.BlockSpec((1, Sd, Hdec), lambda b: (b, 0, 0)),
                pl.BlockSpec((1, Se, hd), lambda b: (b, 0, 0)),
                pl.BlockSpec((1, Se, hd), lambda b: (b, 0, 0)),
            ],
            scratch_shapes=[
                pltpu.VMEM((Sd, hd), compute_dtype),   # per-batch context buffer
            ],
        ),
        compiler_params=pltpu.CompilerParams(
            dimension_semantics=("parallel",),
            vmem_limit_bytes=32 * 1024 * 1024,
        ),
    )(x, encoder_outputs,
      prepared["wq_t"], prepared["bq"],
      prepared["wk_t"], prepared["bk"],
      prepared["wv_t"], prepared["bv"],
      prepared["wo_t"], prepared["bo"])

    return out, (k_cache, v_cache)


def _reference(x, enc, params, *, num_heads, head_size):
    """Pure-JAX f32 reference mirroring the PyTorch forward (no cache, masked=False)."""
    hd = num_heads * head_size
    B, Sd, _ = x.shape
    _, Se, _ = enc.shape
    q = x @ params["wq"].T + params["bq"]
    kv = enc @ params["wkv"].T + params["bkv"]
    k, v = kv[..., :hd], kv[..., hd:]
    qh = q.reshape(B, Sd, num_heads, head_size).transpose(0, 2, 1, 3)
    kh = k.reshape(B, Se, num_heads, head_size).transpose(0, 2, 1, 3)
    vh = v.reshape(B, Se, num_heads, head_size).transpose(0, 2, 1, 3)
    s = jnp.einsum("bhid,bhjd->bhij", qh, kh) * (1.0 / (head_size ** 0.5))
    p = jax.nn.softmax(s, axis=-1)
    o = jnp.einsum("bhij,bhjd->bhid", p, vh)
    o = o.transpose(0, 2, 1, 3).reshape(B, Sd, hd)
    return o @ params["wo"].T + params["bo"], (k, v)


def _init_params(key, *, encoder_hidden, decoder_hidden, num_heads, head_size):
    """Deterministic PyTorch-Linear-style init (uniform +-1/sqrt(fan_in))."""
    hd = num_heads * head_size
    keys = jax.random.split(key, 6)

    def lin(kw, kb, out_f, in_f):
        bound = 1.0 / np.sqrt(in_f)
        w = jax.random.uniform(kw, (out_f, in_f), jnp.float32, -bound, bound)
        b = jax.random.uniform(kb, (1, out_f), jnp.float32, -bound, bound)
        return w, b

    wq, bq = lin(keys[0], keys[1], hd, decoder_hidden)
    wkv, bkv = lin(keys[2], keys[3], 2 * hd, encoder_hidden)
    wo, bo = lin(keys[4], keys[5], decoder_hidden, hd)
    return {"wq": wq, "bq": bq, "wkv": wkv, "bkv": bkv, "wo": wo, "bo": bo}


if __name__ == "__main__":
    # Small shapes consistent with the module.
    B = 2
    S_DEC = 8
    S_ENC = 16
    DECODER_HIDDEN = 32
    ENCODER_HIDDEN = 24
    NUM_HEADS = 4
    HEAD_SIZE = DECODER_HIDDEN // NUM_HEADS  # 8

    root = jax.random.PRNGKey(0)
    k_params, k_x, k_enc = jax.random.split(root, 3)

    params = _init_params(k_params,
                          encoder_hidden=ENCODER_HIDDEN,
                          decoder_hidden=DECODER_HIDDEN,
                          num_heads=NUM_HEADS,
                          head_size=HEAD_SIZE)

    x = jax.random.normal(k_x, (B, S_DEC, DECODER_HIDDEN), jnp.float32)
    enc = jax.random.normal(k_enc, (B, S_ENC, ENCODER_HIDDEN), jnp.float32)

    # One-time parameter preparation (transpose / split / scale-fold / cast) —
    # outside the per-call hot path.
    prepared = prepare_params(params, num_heads=NUM_HEADS, head_size=HEAD_SIZE,
                              compute_dtype=jnp.bfloat16)
    prepared = jax.tree_util.tree_map(jax.block_until_ready, prepared)

    out, (k_cache, v_cache) = cross_attention_layer(
        x, enc, prepared, num_heads=NUM_HEADS, head_size=HEAD_SIZE,
        compute_dtype=jnp.bfloat16)
    out = jax.block_until_ready(out)

    ref_out, (ref_k, ref_v) = _reference(
        x, enc, params, num_heads=NUM_HEADS, head_size=HEAD_SIZE)

    # bf16 MXU operands (f32 accumulate) + approx reciprocal + bf16 cache
    # outputs -> compare against the f32 reference at a loosened tolerance.
    np.testing.assert_allclose(np.asarray(out, dtype=np.float32),
                               np.asarray(ref_out), rtol=2e-2, atol=2e-2)
    np.testing.assert_allclose(np.asarray(k_cache.astype(jnp.float32)),
                               np.asarray(ref_k), rtol=2e-2, atol=2e-2)
    np.testing.assert_allclose(np.asarray(v_cache.astype(jnp.float32)),
                               np.asarray(ref_v), rtol=2e-2, atol=2e-2)

    print("KERNEL_OK")
</pallas_src>

<mosaic_0001>
module attributes {stable_mosaic.version = 11 : i64} {
  func.func @_cross_attn_kernel(%arg0: i32, %arg1: memref<1x8x32xf32, #tpu.memory_space<vmem>>, %arg2: memref<1x16x24xf32, #tpu.memory_space<vmem>>, %arg3: memref<32x32xbf16, #tpu.memory_space<vmem>>, %arg4: memref<1x32xf32, #tpu.memory_space<vmem>>, %arg5: memref<24x32xbf16, #tpu.memory_space<vmem>>, %arg6: memref<1x32xf32, #tpu.memory_space<vmem>>, %arg7: memref<24x32xbf16, #tpu.memory_space<vmem>>, %arg8: memref<1x32xf32, #tpu.memory_space<vmem>>, %arg9: memref<32x32xbf16, #tpu.memory_space<vmem>>, %arg10: memref<1x32xf32, #tpu.memory_space<vmem>>, %arg11: memref<1x8x32xf32, #tpu.memory_space<vmem>>, %arg12: memref<1x16x32xbf16, #tpu.memory_space<vmem>>, %arg13: memref<1x16x32xbf16, #tpu.memory_space<vmem>>, %arg14: memref<8x32xbf16, #tpu.memory_space<vmem>>) attributes {dimension_semantics = [#tpu.dimension_semantics<parallel>], iteration_bounds = array<i64: 2>, scalar_prefetch = 0 : i64, scratch_operands = 1 : i64, tpu.core_type = #tpu.core_type<tc>, window_params = [{transform_indices = @transform_0, window_bounds = array<i64: 1, 8, 32>}, {transform_indices = @transform_1, window_bounds = array<i64: 1, 16, 24>}, {pipeline_mode = #tpu.pipeline_mode<synchronous>, transform_indices = @transform_2, window_bounds = array<i64: 32, 32>}, {pipeline_mode = #tpu.pipeline_mode<synchronous>, transform_indices = @transform_3, window_bounds = array<i64: 1, 32>}, {pipeline_mode = #tpu.pipeline_mode<synchronous>, transform_indices = @transform_4, window_bounds = array<i64: 24, 32>}, {pipeline_mode = #tpu.pipeline_mode<synchronous>, transform_indices = @transform_5, window_bounds = array<i64: 1, 32>}, {pipeline_mode = #tpu.pipeline_mode<synchronous>, transform_indices = @transform_6, window_bounds = array<i64: 24, 32>}, {pipeline_mode = #tpu.pipeline_mode<synchronous>, transform_indices = @transform_7, window_bounds = array<i64: 1, 32>}, {pipeline_mode = #tpu.pipeline_mode<synchronous>, transform_indices = @transform_8, window_bounds = array<i64: 32, 32>}, {pipeline_mode = #tpu.pipeline_mode<synchronous>, transform_indices = @transform_9, window_bounds = array<i64: 1, 32>}, {transform_indices = @transform_10, window_bounds = array<i64: 1, 8, 32>}, {transform_indices = @transform_11, window_bounds = array<i64: 1, 16, 32>}, {transform_indices = @transform_12, window_bounds = array<i64: 1, 16, 32>}]} {
    %c0 = arith.constant 0 : index
    %c0_0 = arith.constant 0 : index
    %c0_1 = arith.constant 0 : index
    %0 = vector.load %arg1[%c0, %c0_0, %c0_1] : memref<1x8x32xf32, #tpu.memory_space<vmem>>, vector<1x8x32xf32>
    %1 = vector.shape_cast %0 : vector<1x8x32xf32> to vector<8x32xf32>
    %2 = arith.truncf %1 : vector<8x32xf32> to vector<8x32xbf16>
    %c0_2 = arith.constant 0 : index
    %c0_3 = arith.constant 0 : index
    %c0_4 = arith.constant 0 : index
    %3 = vector.load %arg2[%c0_2, %c0_3, %c0_4] : memref<1x16x24xf32, #tpu.memory_space<vmem>>, vector<1x16x24xf32>
    %4 = vector.shape_cast %3 : vector<1x16x24xf32> to vector<16x24xf32>
    %5 = arith.truncf %4 : vector<16x24xf32> to vector<16x24xbf16>
    %c0_5 = arith.constant 0 : index
    %c0_6 = arith.constant 0 : index
    %6 = vector.load %arg3[%c0_5, %c0_6] : memref<32x32xbf16, #tpu.memory_space<vmem>>, vector<32x32xbf16>
    %cst = arith.constant dense<0.000000e+00> : vector<8x32xf32>
    %7 = tpu.matmul %2, %6, %cst {dimension_numbers = #tpu.dot_dimension_numbers<[1], [0], [0], [1], [0, 0, 1, 1], [], []>} : vector<8x32xbf16>, vector<32x32xbf16>, vector<8x32xf32> -> vector<8x32xf32>
    %c0_7 = arith.constant 0 : index
    %c0_8 = arith.constant 0 : index
    %8 = vector.load %arg4[%c0_7, %c0_8] : memref<1x32xf32, #tpu.memory_space<vmem>>, vector<1x32xf32>
    %9 = vector.broadcast %8 : vector<1x32xf32> to vector<8x32xf32>
    %10 = arith.addf %7, %9 : vector<8x32xf32>
    %c0_9 = arith.constant 0 : index
    %c0_10 = arith.constant 0 : index
    %11 = vector.load %arg5[%c0_9, %c0_10] : memref<24x32xbf16, #tpu.memory_space<vmem>>, vector<24x32xbf16>
    %cst_11 = arith.constant dense<0.000000e+00> : vector<16x32xf32>
    %12 = tpu.matmul %5, %11, %cst_11 {dimension_numbers = #tpu.dot_dimension_numbers<[1], [0], [0], [1], [0, 0, 1, 1], [], []>} : vector<16x24xbf16>, vector<24x32xbf16>, vector<16x32xf32> -> vector<16x32xf32>
    %c0_12 = arith.constant 0 : index
    %c0_13 = arith.constant 0 : index
    %13 = vector.load %arg6[%c0_12, %c0_13] : memref<1x32xf32, #tpu.memory_space<vmem>>, vector<1x32xf32>
    %14 = vector.broadcast %13 : vector<1x32xf32> to vector<16x32xf32>
    %15 = arith.addf %12, %14 : vector<16x32xf32>
    %c0_14 = arith.constant 0 : index
    %c0_15 = arith.constant 0 : index
    %16 = vector.load %arg7[%c0_14, %c0_15] : memref<24x32xbf16, #tpu.memory_space<vmem>>, vector<24x32xbf16>
    %cst_16 = arith.constant dense<0.000000e+00> : vector<16x32xf32>
    %17 = tpu.matmul %5, %16, %cst_16 {dimension_numbers = #tpu.dot_dimension_numbers<[1], [0], [0], [1], [0, 0, 1, 1], [], []>} : vector<16x24xbf16>, vector<24x32xbf16>, vector<16x32xf32> -> vector<16x32xf32>
    %c0_17 = arith.constant 0 : index
    %c0_18 = arith.constant 0 : index
    %18 = vector.load %arg8[%c0_17, %c0_18] : memref<1x32xf32, #tpu.memory_space<vmem>>, vector<1x32xf32>
    %19 = vector.broadcast %18 : vector<1x32xf32> to vector<16x32xf32>
    %20 = arith.addf %17, %19 : vector<16x32xf32>
    %21 = arith.truncf %15 : vector<16x32xf32> to vector<16x32xbf16>
    %c0_19 = arith.constant 0 : index
    %c0_20 = arith.constant 0 : index
    %c0_21 = arith.constant 0 : index
    %22 = vector.load %arg12[%c0_19, %c0_20, %c0_21] : memref<1x16x32xbf16, #tpu.memory_space<vmem>>, vector<1x16x32xbf16>
    %23 = vector.shape_cast %22 : vector<1x16x32xbf16> to vector<16x32xbf16>
    %24 = vector.shape_cast %21 : vector<16x32xbf16> to vector<1x16x32xbf16>
    tpu.vector_store %arg12[%c0_19, %c0_20, %c0_21], %24 {strides = array<i32>} : memref<1x16x32xbf16, #tpu.memory_space<vmem>>, vector<1x16x32xbf16>,
    %25 = arith.truncf %20 : vector<16x32xf32> to vector<16x32xbf16>
    %c0_22 = arith.constant 0 : index
    %c0_23 = arith.constant 0 : index
    %c0_24 = arith.constant 0 : index
    %26 = vector.load %arg13[%c0_22, %c0_23, %c0_24] : memref<1x16x32xbf16, #tpu.memory_space<vmem>>, vector<1x16x32xbf16>
    %27 = vector.shape_cast %26 : vector<1x16x32xbf16> to vector<16x32xbf16>
    %28 = vector.shape_cast %25 : vector<16x32xbf16> to vector<1x16x32xbf16>
    tpu.vector_store %arg13[%c0_22, %c0_23, %c0_24], %28 {strides = array<i32>} : memref<1x16x32xbf16, #tpu.memory_space<vmem>>, vector<1x16x32xbf16>,
    %29 = arith.truncf %10 : vector<8x32xf32> to vector<8x32xbf16>
    %30 = arith.truncf %15 : vector<16x32xf32> to vector<16x32xbf16>
    %31 = arith.truncf %20 : vector<16x32xf32> to vector<16x32xbf16>
    %32 = vector.extract_strided_slice %29 {offsets = [0, 0], sizes = [8, 8], strides = [1, 1]} : vector<8x32xbf16> to vector<8x8xbf16>
    %33 = vector.extract_strided_slice %30 {offsets = [0, 0], sizes = [16, 8], strides = [1, 1]} : vector<16x32xbf16> to vector<16x8xbf16>
    %34 = vector.extract_strided_slice %31 {offsets = [0, 0], sizes = [16, 8], strides = [1, 1]} : vector<16x32xbf16> to vector<16x8xbf16>
    %cst_25 = arith.constant dense<0.000000e+00> : vector<8x16xf32>
    %35 = tpu.matmul %32, %33, %cst_25 {dimension_numbers = #tpu.dot_dimension_numbers<[1], [1], [0], [0], [0, 0, 1, 0], [], []>} : vector<8x8xbf16>, vector<16x8xbf16>, vector<8x16xf32> -> vector<8x16xf32>
    %cst_26 = arith.constant dense<0xFF800000> : vector<8xf32>
    %36 = vector.multi_reduction <maximumf>, %35, %cst_26 [1] : vector<8x16xf32> to vector<8xf32>
    %37 = vector.shape_cast %36 : vector<8xf32> to vector<8x1xf32>
    %38 = vector.broadcast %37 : vector<8x1xf32> to vector<8x16xf32>
    %39 = arith.subf %35, %38 : vector<8x16xf32>
    %40 = math.exp %39 : vector<8x16xf32>
    %cst_27 = arith.constant dense<0.000000e+00> : vector<8xf32>
    %41 = vector.multi_reduction <add>, %40, %cst_27 [1] : vector<8x16xf32> to vector<8xf32>
    %42 = vector.shape_cast %41 : vector<8xf32> to vector<8x1xf32>
    %43 = tpu.reciprocal %42 {approx = true} : vector<8x1xf32> -> vector<8x1xf32>
    %44 = vector.broadcast %43 : vector<8x1xf32> to vector<8x16xf32>
    %45 = arith.mulf %40, %44 : vector<8x16xf32>
    %46 = arith.truncf %45 : vector<8x16xf32> to vector<8x16xbf16>
    %cst_28 = arith.constant dense<0.000000e+00> : vector<8x8xf32>
    %47 = tpu.matmul %46, %34, %cst_28 {dimension_numbers = #tpu.dot_dimension_numbers<[1], [0], [0], [1], [0, 0, 1, 1], [], []>} : vector<8x16xbf16>, vector<16x8xbf16>, vector<8x8xf32> -> vector<8x8xf32>
    %48 = arith.truncf %47 : vector<8x8xf32> to vector<8x8xbf16>
    %c0_29 = arith.constant 0 : index
    %c0_30 = arith.constant 0 : index
    %49 = vector.load %arg14[%c0_29, %c0_30] : memref<8x32xbf16, #tpu.memory_space<vmem>>, vector<8x8xbf16>
    tpu.vector_store %arg14[%c0_29, %c0_30], %48 {strides = array<i32>} : memref<8x32xbf16, #tpu.memory_space<vmem>>, vector<8x8xbf16>,
    %50 = vector.extract_strided_slice %29 {offsets = [0, 8], sizes = [8, 8], strides = [1, 1]} : vector<8x32xbf16> to vector<8x8xbf16>
    %51 = vector.extract_strided_slice %30 {offsets = [0, 8], sizes = [16, 8], strides = [1, 1]} : vector<16x32xbf16> to vector<16x8xbf16>
    %52 = vector.extract_strided_slice %31 {offsets = [0, 8], sizes = [16, 8], strides = [1, 1]} : vector<16x32xbf16> to vector<16x8xbf16>
    %cst_31 = arith.constant dense<0.000000e+00> : vector<8x16xf32>
    %53 = tpu.matmul %50, %51, %cst_31 {dimension_numbers = #tpu.dot_dimension_numbers<[1], [1], [0], [0], [0, 0, 1, 0], [], []>} : vector<8x8xbf16>, vector<16x8xbf16>, vector<8x16xf32> -> vector<8x16xf32>
    %cst_32 = arith.constant dense<0xFF800000> : vector<8xf32>
    %54 = vector.multi_reduction <maximumf>, %53, %cst_32 [1] : vector<8x16xf32> to vector<8xf32>
    %55 = vector.shape_cast %54 : vector<8xf32> to vector<8x1xf32>
    %56 = vector.broadcast %55 : vector<8x1xf32> to vector<8x16xf32>
    %57 = arith.subf %53, %56 : vector<8x16xf32>
    %58 = math.exp %57 : vector<8x16xf32>
    %cst_33 = arith.constant dense<0.000000e+00> : vector<8xf32>
    %59 = vector.multi_reduction <add>, %58, %cst_33 [1] : vector<8x16xf32> to vector<8xf32>
    %60 = vector.shape_cast %59 : vector<8xf32> to vector<8x1xf32>
    %61 = tpu.reciprocal %60 {approx = true} : vector<8x1xf32> -> vector<8x1xf32>
    %62 = vector.broadcast %61 : vector<8x1xf32> to vector<8x16xf32>
    %63 = arith.mulf %58, %62 : vector<8x16xf32>
    %64 = arith.truncf %63 : vector<8x16xf32> to vector<8x16xbf16>
    %cst_34 = arith.constant dense<0.000000e+00> : vector<8x8xf32>
    %65 = tpu.matmul %64, %52, %cst_34 {dimension_numbers = #tpu.dot_dimension_numbers<[1], [0], [0], [1], [0, 0, 1, 1], [], []>} : vector<8x16xbf16>, vector<16x8xbf16>, vector<8x8xf32> -> vector<8x8xf32>
    %66 = arith.truncf %65 : vector<8x8xf32> to vector<8x8xbf16>
    %c0_35 = arith.constant 0 : index
    %c8 = arith.constant 8 : index
    %67 = vector.load %arg14[%c0_35, %c8] : memref<8x32xbf16, #tpu.memory_space<vmem>>, vector<8x8xbf16>
    tpu.vector_store %arg14[%c0_35, %c8], %66 {strides = array<i32>} : memref<8x32xbf16, #tpu.memory_space<vmem>>, vector<8x8xbf16>,
    %68 = vector.extract_strided_slice %29 {offsets = [0, 16], sizes = [8, 8], strides = [1, 1]} : vector<8x32xbf16> to vector<8x8xbf16>
    %69 = vector.extract_strided_slice %30 {offsets = [0, 16], sizes = [16, 8], strides = [1, 1]} : vector<16x32xbf16> to vector<16x8xbf16>
    %70 = vector.extract_strided_slice %31 {offsets = [0, 16], sizes = [16, 8], strides = [1, 1]} : vector<16x32xbf16> to vector<16x8xbf16>
    %cst_36 = arith.constant dense<0.000000e+00> : vector<8x16xf32>
    %71 = tpu.matmul %68, %69, %cst_36 {dimension_numbers = #tpu.dot_dimension_numbers<[1], [1], [0], [0], [0, 0, 1, 0], [], []>} : vector<8x8xbf16>, vector<16x8xbf16>, vector<8x16xf32> -> vector<8x16xf32>
    %cst_37 = arith.constant dense<0xFF800000> : vector<8xf32>
    %72 = vector.multi_reduction <maximumf>, %71, %cst_37 [1] : vector<8x16xf32> to vector<8xf32>
    %73 = vector.shape_cast %72 : vector<8xf32> to vector<8x1xf32>
    %74 = vector.broadcast %73 : vector<8x1xf32> to vector<8x16xf32>
    %75 = arith.subf %71, %74 : vector<8x16xf32>
    %76 = math.exp %75 : vector<8x16xf32>
    %cst_38 = arith.constant dense<0.000000e+00> : vector<8xf32>
    %77 = vector.multi_reduction <add>, %76, %cst_38 [1] : vector<8x16xf32> to vector<8xf32>
    %78 = vector.shape_cast %77 : vector<8xf32> to vector<8x1xf32>
    %79 = tpu.reciprocal %78 {approx = true} : vector<8x1xf32> -> vector<8x1xf32>
    %80 = vector.broadcast %79 : vector<8x1xf32> to vector<8x16xf32>
    %81 = arith.mulf %76, %80 : vector<8x16xf32>
    %82 = arith.truncf %81 : vector<8x16xf32> to vector<8x16xbf16>
    %cst_39 = arith.constant dense<0.000000e+00> : vector<8x8xf32>
    %83 = tpu.matmul %82, %70, %cst_39 {dimension_numbers = #tpu.dot_dimension_numbers<[1], [0], [0], [1], [0, 0, 1, 1], [], []>} : vector<8x16xbf16>, vector<16x8xbf16>, vector<8x8xf32> -> vector<8x8xf32>
    %84 = arith.truncf %83 : vector<8x8xf32> to vector<8x8xbf16>
    %c0_40 = arith.constant 0 : index
    %c16 = arith.constant 16 : index
    %85 = vector.load %arg14[%c0_40, %c16] : memref<8x32xbf16, #tpu.memory_space<vmem>>, vector<8x8xbf16>
    tpu.vector_store %arg14[%c0_40, %c16], %84 {strides = array<i32>} : memref<8x32xbf16, #tpu.memory_space<vmem>>, vector<8x8xbf16>,
    %86 = vector.extract_strided_slice %29 {offsets = [0, 24], sizes = [8, 8], strides = [1, 1]} : vector<8x32xbf16> to vector<8x8xbf16>
    %87 = vector.extract_strided_slice %30 {offsets = [0, 24], sizes = [16, 8], strides = [1, 1]} : vector<16x32xbf16> to vector<16x8xbf16>
    %88 = vector.extract_strided_slice %31 {offsets = [0, 24], sizes = [16, 8], strides = [1, 1]} : vector<16x32xbf16> to vector<16x8xbf16>
    %cst_41 = arith.constant dense<0.000000e+00> : vector<8x16xf32>
    %89 = tpu.matmul %86, %87, %cst_41 {dimension_numbers = #tpu.dot_dimension_numbers<[1], [1], [0], [0], [0, 0, 1, 0], [], []>} : vector<8x8xbf16>, vector<16x8xbf16>, vector<8x16xf32> -> vector<8x16xf32>
    %cst_42 = arith.constant dense<0xFF800000> : vector<8xf32>
    %90 = vector.multi_reduction <maximumf>, %89, %cst_42 [1] : vector<8x16xf32> to vector<8xf32>
    %91 = vector.shape_cast %90 : vector<8xf32> to vector<8x1xf32>
    %92 = vector.broadcast %91 : vector<8x1xf32> to vector<8x16xf32>
    %93 = arith.subf %89, %92 : vector<8x16xf32>
    %94 = math.exp %93 : vector<8x16xf32>
    %cst_43 = arith.constant dense<0.000000e+00> : vector<8xf32>
    %95 = vector.multi_reduction <add>, %94, %cst_43 [1] : vector<8x16xf32> to vector<8xf32>
    %96 = vector.shape_cast %95 : vector<8xf32> to vector<8x1xf32>
    %97 = tpu.reciprocal %96 {approx = true} : vector<8x1xf32> -> vector<8x1xf32>
    %98 = vector.broadcast %97 : vector<8x1xf32> to vector<8x16xf32>
    %99 = arith.mulf %94, %98 : vector<8x16xf32>
    %100 = arith.truncf %99 : vector<8x16xf32> to vector<8x16xbf16>
    %cst_44 = arith.constant dense<0.000000e+00> : vector<8x8xf32>
    %101 = tpu.matmul %100, %88, %cst_44 {dimension_numbers = #tpu.dot_dimension_numbers<[1], [0], [0], [1], [0, 0, 1, 1], [], []>} : vector<8x16xbf16>, vector<16x8xbf16>, vector<8x8xf32> -> vector<8x8xf32>
    %102 = arith.truncf %101 : vector<8x8xf32> to vector<8x8xbf16>
    %c0_45 = arith.constant 0 : index
    %c24 = arith.constant 24 : index
    %103 = vector.load %arg14[%c0_45, %c24] : memref<8x32xbf16, #tpu.memory_space<vmem>>, vector<8x8xbf16>
    tpu.vector_store %arg14[%c0_45, %c24], %102 {strides = array<i32>} : memref<8x32xbf16, #tpu.memory_space<vmem>>, vector<8x8xbf16>,
    %c0_46 = arith.constant 0 : index
    %c0_47 = arith.constant 0 : index
    %104 = vector.load %arg14[%c0_46, %c0_47] : memref<8x32xbf16, #tpu.memory_space<vmem>>, vector<8x32xbf16>
    %c0_48 = arith.constant 0 : index
    %c0_49 = arith.constant 0 : index
    %105 = vector.load %arg9[%c0_48, %c0_49] : memref<32x32xbf16, #tpu.memory_space<vmem>>, vector<32x32xbf16>
    %cst_50 = arith.constant dense<0.000000e+00> : vector<8x32xf32>
    %106 = tpu.matmul %104, %105, %cst_50 {dimension_numbers = #tpu.dot_dimension_numbers<[1], [0], [0], [1], [0, 0, 1, 1], [], []>} : vector<8x32xbf16>, vector<32x32xbf16>, vector<8x32xf32> -> vector<8x32xf32>
    %c0_51 = arith.constant 0 : index
    %c0_52 = arith.constant 0 : index
    %107 = vector.load %arg10[%c0_51, %c0_52] : memref<1x32xf32, #tpu.memory_space<vmem>>, vector<1x32xf32>
    %108 = vector.broadcast %107 : vector<1x32xf32> to vector<8x32xf32>
    %109 = arith.addf %106, %108 : vector<8x32xf32>
    %c0_53 = arith.constant 0 : index
    %c0_54 = arith.constant 0 : index
    %c0_55 = arith.constant 0 : index
    %110 = vector.load %arg11[%c0_53, %c0_54, %c0_55] : memref<1x8x32xf32, #tpu.memory_space<vmem>>, vector<1x8x32xf32>
    %111 = vector.shape_cast %110 : vector<1x8x32xf32> to vector<8x32xf32>
    %112 = vector.shape_cast %109 : vector<8x32xf32> to vector<1x8x32xf32>
    tpu.vector_store %arg11[%c0_53, %c0_54, %c0_55], %112 {strides = array<i32>} : memref<1x8x32xf32, #tpu.memory_space<vmem>>, vector<1x8x32xf32>,
    return
  }
  func.func @transform_0(%arg0: i32) -> (i32, i32, i32) {
    %c0_i32 = arith.constant 0 : i32
    %c0_i32_0 = arith.constant 0 : i32
    %c0_i32_1 = arith.constant 0 : i32
    return %arg0, %c0_i32, %c0_i32_0 : i32, i32, i32
  }
  func.func @transform_1(%arg0: i32) -> (i32, i32, i32) {
    %c0_i32 = arith.constant 0 : i32
    %c0_i32_0 = arith.constant 0 : i32
    %c0_i32_1 = arith.constant 0 : i32
    return %arg0, %c0_i32, %c0_i32_0 : i32, i32, i32
  }
  func.func @transform_2(%arg0: i32) -> (i32, i32) {
    %c0_i32 = arith.constant 0 : i32
    %c0_i32_0 = arith.constant 0 : i32
    %c0_i32_1 = arith.constant 0 : i32
    return %c0_i32, %c0_i32_0 : i32, i32
  }
  func.func @transform_3(%arg0: i32) -> (i32, i32) {
    %c0_i32 = arith.constant 0 : i32
    %c0_i32_0 = arith.constant 0 : i32
    %c0_i32_1 = arith.constant 0 : i32
    return %c0_i32, %c0_i32_0 : i32, i32
  }
  func.func @transform_4(%arg0: i32) -> (i32, i32) {
    %c0_i32 = arith.constant 0 : i32
    %c0_i32_0 = arith.constant 0 : i32
    %c0_i32_1 = arith.constant 0 : i32
    return %c0_i32, %c0_i32_0 : i32, i32
  }
  func.func @transform_5(%arg0: i32) -> (i32, i32) {
    %c0_i32 = arith.constant 0 : i32
    %c0_i32_0 = arith.constant 0 : i32
    %c0_i32_1 = arith.constant 0 : i32
    return %c0_i32, %c0_i32_0 : i32, i32
  }
  func.func @transform_6(%arg0: i32) -> (i32, i32) {
    %c0_i32 = arith.constant 0 : i32
    %c0_i32_0 = arith.constant 0 : i32
    %c0_i32_1 = arith.constant 0 : i32
    return %c0_i32, %c0_i32_0 : i32, i32
  }
  func.func @transform_7(%arg0: i32) -> (i32, i32) {
    %c0_i32 = arith.constant 0 : i32
    %c0_i32_0 = arith.constant 0 : i32
    %c0_i32_1 = arith.constant 0 : i32
    return %c0_i32, %c0_i32_0 : i32, i32
  }
  func.func @transform_8(%arg0: i32) -> (i32, i32) {
    %c0_i32 = arith.constant 0 : i32
    %c0_i32_0 = arith.constant 0 : i32
    %c0_i32_1 = arith.constant 0 : i32
    return %c0_i32, %c0_i32_0 : i32, i32
  }
  func.func @transform_9(%arg0: i32) -> (i32, i32) {
    %c0_i32 = arith.constant 0 : i32
    %c0_i32_0 = arith.constant 0 : i32
    %c0_i32_1 = arith.constant 0 : i32
    return %c0_i32, %c0_i32_0 : i32, i32
  }
  func.func @transform_10(%arg0: i32) -> (i32, i32, i32) {
    %c0_i32 = arith.constant 0 : i32
    %c0_i32_0 = arith.constant 0 : i32
    %c0_i32_1 = arith.constant 0 : i32
    return %arg0, %c0_i32, %c0_i32_0 : i32, i32, i32
  }
  func.func @transform_11(%arg0: i32) -> (i32, i32, i32) {
    %c0_i32 = arith.constant 0 : i32
    %c0_i32_0 = arith.constant 0 : i32
    %c0_i32_1 = arith.constant 0 : i32
    return %arg0, %c0_i32, %c0_i32_0 : i32, i32, i32
  }
  func.func @transform_12(%arg0: i32) -> (i32, i32, i32) {
    %c0_i32 = arith.constant 0 : i32
    %c0_i32_0 = arith.constant 0 : i32
    %c0_i32_1 = arith.constant 0 : i32
    return %arg0, %c0_i32, %c0_i32_0 : i32, i32, i32
  }
}

</mosaic_0001>

<llo_original>
// kernel: tpu_custom_call.1
$region0: #{tpu_custom_call.1}
  #allocation0 [shape = 'u32[]', space=smem, size = 0x4, offset = 0x4, fixed_abs, tag = 'smem constant byte address 0x4 - core index']
  #allocation1 [shape = 'u32[144,128]{1,0:T(1,128)}', space=vmem, size = 0x12000, scoped, tag = 'internal scratch']
  #allocation2 [shape = 'bf16[8,32]{1,0:T(8,128)(2,1)}', space=vmem, size = 0x800, scoped, tag = 'scratch operand']
  %s0 = inlined_call_operand.hbm [shape: f32[2,8,32], index: 0, kind: input, shape index: {}]
  %s1 = inlined_call_operand.hbm [shape: f32[2,16,24], index: 1, kind: input, shape index: {}]
  %s2 = inlined_call_operand.hbm [shape: bf16[32,32], index: 2, kind: input, shape index: {}]
  %s3 = inlined_call_operand.vmem [shape: f32[1,32], index: 3, kind: input, shape index: {}]
  %s4 = inlined_call_operand.vmem [shape: bf16[24,32], index: 4, kind: input, shape index: {}]
  %s5 = inlined_call_operand.vmem [shape: f32[1,32], index: 5, kind: input, shape index: {}]
  %s6 = inlined_call_operand.hbm [shape: bf16[24,32], index: 6, kind: input, shape index: {}]
  %s7 = inlined_call_operand.hbm [shape: f32[1,32], index: 7, kind: input, shape index: {}]
  %s8 = inlined_call_operand.vmem [shape: bf16[32,32], index: 8, kind: input, shape index: {}]
  %s9 = inlined_call_operand.vmem [shape: f32[1,32], index: 9, kind: input, shape index: {}]
  %s10 = inlined_call_operand.hbm [shape: f32[2,8,32], index: 10, kind: output, shape index: {0}]
  %s11 = inlined_call_operand.hbm [shape: bf16[2,16,32], index: 11, kind: output, shape index: {1}]
  %s12 = inlined_call_operand.hbm [shape: bf16[2,16,32], index: 12, kind: output, shape index: {2}]
  %13 = xla_tuple %s10, %s11, %s12
  %s14 = sld [smem:[#allocation0]]
  $region109: #{tpu_custom_call.1} parent=0
    _
  %s16 = ssub.s32 1, %s14
  %s17 = scalar_select 0, %s16, %s14
  $region1: #{tpu_custom_call.1} parent=0
    #allocation3 [shape = 'u8[8192]{0}', space=vmem, size = 0x2000, scoped, tag = 'input window, operand 0']
    #allocation4 [shape = 's32[2]{0}', space=sflag, size = 0x8, scoped, tag = 'scoped memory for tpu_custom_call.1']
    #allocation5 [shape = 's32[2]{0}', space=sflag, size = 0x8, scoped, tag = 'scoped memory for tpu_custom_call.1']
    #allocation6 [shape = 'u8[16384]{0}', space=vmem, size = 0x4000, scoped, tag = 'input window, operand 1']
    #allocation7 [shape = 's32[2]{0}', space=sflag, size = 0x8, scoped, tag = 'scoped memory for tpu_custom_call.1']
    #allocation8 [shape = 'u8[8192]{0}', space=vmem, size = 0x2000, scoped, tag = 'input window, operand 2, single buffered']
    #allocation9 [shape = 'u8[6144]{0}', space=vmem, size = 0x1800, scoped, tag = 'input window, operand 6, single buffered']
    #allocation10 [shape = 's32[1]{0}', space=sflag, size = 0x4, scoped, tag = 'scoped memory for tpu_custom_call.1']
    #allocation11 [shape = 'u8[512]{0}', space=vmem, size = 0x400, scoped, tag = 'input window, operand 7, single buffered']
    #allocation12 [shape = 'u8[8192]{0}', space=vmem, size = 0x2000, scoped, tag = 'output window, operand 0']
    #allocation13 [shape = 'u8[8192]{0}', space=vmem, size = 0x2000, scoped, tag = 'output window, operand 1']
    #allocation14 [shape = 's32[2]{0}', space=sflag, size = 0x8, scoped, tag = 'scoped memory for tpu_custom_call.1']
    #allocation15 [shape = 'u8[8192]{0}', space=vmem, size = 0x2000, scoped, tag = 'output window, operand 2']
    %18 = vsyncpa [#allocation4], 0
    %s19 = scalar_lea.sflag [#allocation4], 1
    %20 = vsyncpa %s19, 0
    %21 = vsyncpa [#allocation7], 0
    %s22 = scalar_lea.sflag [#allocation7], 1
    %23 = vsyncpa %s22, 0
    %24 = vsyncpa [#allocation10], 0
    %25 = vsyncpa [#allocation5], 0
    %s26 = scalar_lea.sflag [#allocation5], 1
    %27 = vsyncpa %s26, 0
    %28 = vsyncpa [#allocation14], 0
    %s29 = scalar_lea.sflag [#allocation14], 1
    %30 = vsyncpa %s29, 0
    loop: start=0, step=1, limit=4
    $region2: #{tpu_custom_call.1} parent=1 // loop_pre_header
      _
    $region3: #{tpu_custom_call.1} parent=1 // loop_header
      %s32 = sphi 0, %s36
      %p33 = scmp.ge.s32.totalorder %s32, 4
      %s42 = sphi 0, %s44
      %s45 = sphi 0, %s42
      %s46 = sphi 0, %s45
      %s62 = sphi 0, %s46
      %s68 = sphi 0, %s70
      %s71 = sphi 0, %s68
      %s72 = sphi 0, %s71
      %s88 = sphi 0, %s72
      %s92 = sphi 0, %s92
      %s94 = sphi 0, %s92
      %s95 = sphi 0, %s94
      %s109 = sphi 0, %s95
      %s113 = sphi 0, %s113
      %s115 = sphi 0, %s113
      %s116 = sphi 0, %s115
      %s130 = sphi 0, %s116
      %s134 = sphi 0, %s134
      %s136 = sphi 0, %s134
      %s137 = sphi 0, %s136
      %s151 = sphi 0, %s137
      %s155 = sphi 0, %s155
      %s157 = sphi 0, %s155
      %s158 = sphi 0, %s157
      %s172 = sphi 0, %s158
      %s176 = sphi 0, %s176
      %s178 = sphi 0, %s176
      %s179 = sphi 0, %s178
      %s193 = sphi 0, %s179
      %s197 = sphi 0, %s197
      %s199 = sphi 0, %s197
      %s200 = sphi 0, %s199
      %s214 = sphi 0, %s200
      %s218 = sphi 0, %s218
      %s220 = sphi 0, %s218
      %s221 = sphi 0, %s220
      %s235 = sphi 0, %s221
      %s239 = sphi 0, %s239
      %s241 = sphi 0, %s239
      %s242 = sphi 0, %s241
      %s256 = sphi 0, %s242
      %s262 = sphi 0, %s264
      %s265 = sphi 0, %s262
      %s266 = sphi 0, %s265
      %s282 = sphi 0, %s266
      %s288 = sphi 0, %s290
      %s291 = sphi 0, %s288
      %s292 = sphi 0, %s291
      %s308 = sphi 0, %s292
      %s314 = sphi 0, %s316
      %s317 = sphi 0, %s314
      %s318 = sphi 0, %s317
      %s334 = sphi 0, %s318
    $region4: #{tpu_custom_call.1} parent=1 // loop_header_branch
      %35 = sbr.rel (%p33) target = $region8
    $region5: #{tpu_custom_call.1} parent=1 // loop_body
      %s37 = ssub.s32 %s32, 1
      %s38 = ssub.s32 %s32, 2
      %s39 = sadd.s32 %s32, 1
      %s40 = ssub.s32 %s32, %s39
      %p41 = scmp.eq.s32.totalorder %s40, 0
      %s43 = sadd.s32 %s42, 1
      %s44 = scalar_select %p41, %s42, %s43
      %p47 = pneg %p41
      %p48 = scmp.eq.s32.totalorder %s32, 1
      %p49 = por %p47, %p48
      %p50 = scmp.ne.s32.totalorder %s42, %s45
      %p51 = scmp.eq.s32.totalorder %s32, 0
      %p52 = por %p50, %p51
      %p53 = scmp.ne.s32.totalorder %s42, %s45
      %p54 = scmp.eq.s32.totalorder %s37, 1
      %p55 = por %p53, %p54
      %p56 = scmp.ne.s32.totalorder %s45, %s46
      %p57 = scmp.eq.s32.totalorder %s37, 0
      %p58 = por %p56, %p57
      %p59 = scmp.ne.s32.totalorder %s45, %s46
      %p60 = scmp.eq.s32.totalorder %s38, 1
      %p61 = por %p59, %p60
      %p63 = scmp.ne.s32.totalorder %s46, %s62
      %p64 = scmp.eq.s32.totalorder %s38, 0
      %p65 = por %p63, %p64
      %s66 = ssub.s32 %s32, %s39
      %p67 = scmp.eq.s32.totalorder %s66, 0
      %s69 = sadd.s32 %s68, 1
      %s70 = scalar_select %p67, %s68, %s69
      %p73 = pneg %p67
      %p74 = scmp.eq.s32.totalorder %s32, 1
      %p75 = por %p73, %p74
      %p76 = scmp.ne.s32.totalorder %s68, %s71
      %p77 = scmp.eq.s32.totalorder %s32, 0
      %p78 = por %p76, %p77
      %p79 = scmp.ne.s32.totalorder %s68, %s71
      %p80 = scmp.eq.s32.totalorder %s37, 1
      %p81 = por %p79, %p80
      %p82 = scmp.ne.s32.totalorder %s71, %s72
      %p83 = scmp.eq.s32.totalorder %s37, 0
      %p84 = por %p82, %p83
      %p85 = scmp.ne.s32.totalorder %s71, %s72
      %p86 = scmp.eq.s32.totalorder %s38, 1
      %p87 = por %p85, %p86
      %p89 = scmp.ne.s32.totalorder %s72, %s88
      %p90 = scmp.eq.s32.totalorder %s38, 0
      %p91 = por %p89, %p90
      %s93 = sadd.s32 %s92, 1
      %p96 = scmp.eq.s32.totalorder %s32, 1
      %p97 = scmp.ne.s32.totalorder %s92, %s94
      %p98 = scmp.eq.s32.totalorder %s32, 0
      %p99 = por %p97, %p98
      %p100 = scmp.ne.s32.totalorder %s92, %s94
      %p101 = scmp.eq.s32.totalorder %s37, 1
      %p102 = por %p100, %p101
      %p103 = scmp.ne.s32.totalorder %s94, %s95
      %p104 = scmp.eq.s32.totalorder %s37, 0
      %p105 = por %p103, %p104
      %p106 = scmp.ne.s32.totalorder %s94, %s95
      %p107 = scmp.eq.s32.totalorder %s38, 1
      %p108 = por %p106, %p107
      %p110 = scmp.ne.s32.totalorder %s95, %s109
      %p111 = scmp.eq.s32.totalorder %s38, 0
      %p112 = por %p110, %p111
      %s114 = sadd.s32 %s113, 1
      %p117 = scmp.eq.s32.totalorder %s32, 1
      %p118 = scmp.ne.s32.totalorder %s113, %s115
      %p119 = scmp.eq.s32.totalorder %s32, 0
      %p120 = por %p118, %p119
      %p121 = scmp.ne.s32.totalorder %s113, %s115
      %p122 = scmp.eq.s32.totalorder %s37, 1
      %p123 = por %p121, %p122
      %p124 = scmp.ne.s32.totalorder %s115, %s116
      %p125 = scmp.eq.s32.totalorder %s37, 0
      %p126 = por %p124, %p125
      %p127 = scmp.ne.s32.totalorder %s115, %s116
      %p128 = scmp.eq.s32.totalorder %s38, 1
      %p129 = por %p127, %p128
      %p131 = scmp.ne.s32.totalorder %s116, %s130
      %p132 = scmp.eq.s32.totalorder %s38, 0
      %p133 = por %p131, %p132
      %s135 = sadd.s32 %s134, 1
      %p138 = scmp.eq.s32.totalorder %s32, 1
      %p139 = scmp.ne.s32.totalorder %s134, %s136
      %p140 = scmp.eq.s32.totalorder %s32, 0
      %p141 = por %p139, %p140
      %p142 = scmp.ne.s32.totalorder %s134, %s136
      %p143 = scmp.eq.s32.totalorder %s37, 1
      %p144 = por %p142, %p143
      %p145 = scmp.ne.s32.totalorder %s136, %s137
      %p146 = scmp.eq.s32.totalorder %s37, 0
      %p147 = por %p145, %p146
      %p148 = scmp.ne.s32.totalorder %s136, %s137
      %p149 = scmp.eq.s32.totalorder %s38, 1
      %p150 = por %p148, %p149
      %p152 = scmp.ne.s32.totalorder %s137, %s151
      %p153 = scmp.eq.s32.totalorder %s38, 0
      %p154 = por %p152, %p153
      %s156 = sadd.s32 %s155, 1
      %p159 = scmp.eq.s32.totalorder %s32, 1
      %p160 = scmp.ne.s32.totalorder %s155, %s157
      %p161 = scmp.eq.s32.totalorder %s32, 0
      %p162 = por %p160, %p161
      %p163 = scmp.ne.s32.totalorder %s155, %s157
      %p164 = scmp.eq.s32.totalorder %s37, 1
      %p165 = por %p163, %p164
      %p166 = scmp.ne.s32.totalorder %s157, %s158
      %p167 = scmp.eq.s32.totalorder %s37, 0
      %p168 = por %p166, %p167
      %p169 = scmp.ne.s32.totalorder %s157, %s158
      %p170 = scmp.eq.s32.totalorder %s38, 1
      %p171 = por %p169, %p170
      %p173 = scmp.ne.s32.totalorder %s158, %s172
      %p174 = scmp.eq.s32.totalorder %s38, 0
      %p175 = por %p173, %p174
      %s177 = sadd.s32 %s176, 1
      %p180 = scmp.eq.s32.totalorder %s32, 1
      %p181 = scmp.ne.s32.totalorder %s176, %s178
      %p182 = scmp.eq.s32.totalorder %s32, 0
      %p183 = por %p181, %p182
      %p184 = scmp.ne.s32.totalorder %s176, %s178
      %p185 = scmp.eq.s32.totalorder %s37, 1
      %p186 = por %p184, %p185
      %p187 = scmp.ne.s32.totalorder %s178, %s179
      %p188 = scmp.eq.s32.totalorder %s37, 0
      %p189 = por %p187, %p188
      %p190 = scmp.ne.s32.totalorder %s178, %s179
      %p191 = scmp.eq.s32.totalorder %s38, 1
      %p192 = por %p190, %p191
      %p194 = scmp.ne.s32.totalorder %s179, %s193
      %p195 = scmp.eq.s32.totalorder %s38, 0
      %p196 = por %p194, %p195
      %s198 = sadd.s32 %s197, 1
      %p201 = scmp.eq.s32.totalorder %s32, 1
      %p202 = scmp.ne.s32.totalorder %s197, %s199
      %p203 = scmp.eq.s32.totalorder %s32, 0
      %p204 = por %p202, %p203
      %p205 = scmp.ne.s32.totalorder %s197, %s199
      %p206 = scmp.eq.s32.totalorder %s37, 1
      %p207 = por %p205, %p206
      %p208 = scmp.ne.s32.totalorder %s199, %s200
      %p209 = scmp.eq.s32.totalorder %s37, 0
      %p210 = por %p208, %p209
      %p211 = scmp.ne.s32.totalorder %s199, %s200
      %p212 = scmp.eq.s32.totalorder %s38, 1
      %p213 = por %p211, %p212
      %p215 = scmp.ne.s32.totalorder %s200, %s214
      %p216 = scmp.eq.s32.totalorder %s38, 0
      %p217 = por %p215, %p216
      %s219 = sadd.s32 %s218, 1
      %p222 = scmp.eq.s32.totalorder %s32, 1
      %p223 = scmp.ne.s32.totalorder %s218, %s220
      %p224 = scmp.eq.s32.totalorder %s32, 0
      %p225 = por %p223, %p224
      %p226 = scmp.ne.s32.totalorder %s218, %s220
      %p227 = scmp.eq.s32.totalorder %s37, 1
      %p228 = por %p226, %p227
      %p229 = scmp.ne.s32.totalorder %s220, %s221
      %p230 = scmp.eq.s32.totalorder %s37, 0
      %p231 = por %p229, %p230
      %p232 = scmp.ne.s32.totalorder %s220, %s221
      %p233 = scmp.eq.s32.totalorder %s38, 1
      %p234 = por %p232, %p233
      %p236 = scmp.ne.s32.totalorder %s221, %s235
      %p237 = scmp.eq.s32.totalorder %s38, 0
      %p238 = por %p236, %p237
      %s240 = sadd.s32 %s239, 1
      %p243 = scmp.eq.s32.totalorder %s32, 1
      %p244 = scmp.ne.s32.totalorder %s239, %s241
      %p245 = scmp.eq.s32.totalorder %s32, 0
      %p246 = por %p244, %p245
      %p247 = scmp.ne.s32.totalorder %s239, %s241
      %p248 = scmp.eq.s32.totalorder %s37, 1
      %p249 = por %p247, %p248
      %p250 = scmp.ne.s32.totalorder %s241, %s242
      %p251 = scmp.eq.s32.totalorder %s37, 0
      %p252 = por %p250, %p251
      %p253 = scmp.ne.s32.totalorder %s241, %s242
      %p254 = scmp.eq.s32.totalorder %s38, 1
      %p255 = por %p253, %p254
      %p257 = scmp.ne.s32.totalorder %s242, %s256
      %p258 = scmp.eq.s32.totalorder %s38, 0
      %p259 = por %p257, %p258
      %s260 = ssub.s32 %s32, %s39
      %p261 = scmp.eq.s32.totalorder %s260, 0
      %s263 = sadd.s32 %s262, 1
      %s264 = scalar_select %p261, %s262, %s263
      %p267 = pneg %p261
      %p268 = scmp.eq.s32.totalorder %s32, 1
      %p269 = por %p267, %p268
      %p270 = scmp.ne.s32.totalorder %s262, %s265
      %p271 = scmp.eq.s32.totalorder %s32, 0
      %p272 = por %p270, %p271
      %p273 = scmp.ne.s32.totalorder %s262, %s265
      %p274 = scmp.eq.s32.totalorder %s37, 1
      %p275 = por %p273, %p274
      %p276 = scmp.ne.s32.totalorder %s265, %s266
      %p277 = scmp.eq.s32.totalorder %s37, 0
      %p278 = por %p276, %p277
      %p279 = scmp.ne.s32.totalorder %s265, %s266
      %p280 = scmp.eq.s32.totalorder %s38, 1
      %p281 = por %p279, %p280
      %p283 = scmp.ne.s32.totalorder %s266, %s282
      %p284 = scmp.eq.s32.totalorder %s38, 0
      %p285 = por %p283, %p284
      %s286 = ssub.s32 %s32, %s39
      %p287 = scmp.eq.s32.totalorder %s286, 0
      %s289 = sadd.s32 %s288, 1
      %s290 = scalar_select %p287, %s288, %s289
      %p293 = pneg %p287
      %p294 = scmp.eq.s32.totalorder %s32, 1
      %p295 = por %p293, %p294
      %p296 = scmp.ne.s32.totalorder %s288, %s291
      %p297 = scmp.eq.s32.totalorder %s32, 0
      %p298 = por %p296, %p297
      %p299 = scmp.ne.s32.totalorder %s288, %s291
      %p300 = scmp.eq.s32.totalorder %s37, 1
      %p301 = por %p299, %p300
      %p302 = scmp.ne.s32.totalorder %s291, %s292
      %p303 = scmp.eq.s32.totalorder %s37, 0
      %p304 = por %p302, %p303
      %p305 = scmp.ne.s32.totalorder %s291, %s292
      %p306 = scmp.eq.s32.totalorder %s38, 1
      %p307 = por %p305, %p306
      %p309 = scmp.ne.s32.totalorder %s292, %s308
      %p310 = scmp.eq.s32.totalorder %s38, 0
      %p311 = por %p309, %p310
      %s312 = ssub.s32 %s32, %s39
      %p313 = scmp.eq.s32.totalorder %s312, 0
      %s315 = sadd.s32 %s314, 1
      %s316 = scalar_select %p313, %s314, %s315
      %p319 = pneg %p313
      %p320 = scmp.eq.s32.totalorder %s32, 1
      %p321 = por %p319, %p320
      %p322 = scmp.ne.s32.totalorder %s314, %s317
      %p323 = scmp.eq.s32.totalorder %s32, 0
      %p324 = por %p322, %p323
      %p325 = scmp.ne.s32.totalorder %s314, %s317
      %p326 = scmp.eq.s32.totalorder %s37, 1
      %p327 = por %p325, %p326
      %p328 = scmp.ne.s32.totalorder %s317, %s318
      %p329 = scmp.eq.s32.totalorder %s37, 0
      %p330 = por %p328, %p329
      %p331 = scmp.ne.s32.totalorder %s317, %s318
      %p332 = scmp.eq.s32.totalorder %s38, 1
      %p333 = por %p331, %p332
      %p335 = scmp.ne.s32.totalorder %s318, %s334
      %p336 = scmp.eq.s32.totalorder %s38, 0
      %p337 = por %p335, %p336
      %p338 = scmp.le.s32.totalorder 1, %s32
      %p339 = scmp.lt.s32.totalorder %s32, 3
      %p340 = pnand %p338, %p339
      %p341 = pneg %p340
      // Predicated region
      $region9: #{tpu_custom_call.1} parent=5 // pred_check
        _
      $region10: #{tpu_custom_call.1} parent=5 // pred_check_branch
        %343 = sbr.rel (%p340) target = $region12
      $region11: #{tpu_custom_call.1} parent=5 // pred_region
        %s344 = ssub.s32 %s32, 1
        // Predicated region
        $region13: #{tpu_custom_call.1} parent=11 // pred_check
          %p345 = pneg %p105
        $region14: #{tpu_custom_call.1} parent=11 // pred_check_branch
          %347 = sbr.rel (%p345) target = $region16
        $region15: #{tpu_custom_call.1} parent=11 // pred_region
          %s349 = ssub.s32 256, 256
          %350 = vsyncadd [#allocation7], %s349
          %s351 = sshll.u32 [#allocation8], 4
          %s352 = int_to_ptr.vmem [resolvable:$true] %s351
          %357 = dma.hbm_to_vmem [thread:$0]  %s2, 256, %s352, [#allocation7], 64, 64, 4
        $region16: #{tpu_custom_call.1} parent=11 // pred_fallthru
          _
        // Predicated region
        $region17: #{tpu_custom_call.1} parent=11 // pred_check
          %p358 = pneg %p126
        $region18: #{tpu_custom_call.1} parent=11 // pred_check_branch
          %360 = sbr.rel (%p358) target = $region20
        $region19: #{tpu_custom_call.1} parent=11 // pred_region
          _
        $region20: #{tpu_custom_call.1} parent=11 // pred_fallthru
          _
        // Predicated region
        $region21: #{tpu_custom_call.1} parent=11 // pred_check
          %p361 = pneg %p147
        $region22: #{tpu_custom_call.1} parent=11 // pred_check_branch
          %363 = sbr.rel (%p361) target = $region24
        $region23: #{tpu_custom_call.1} parent=11 // pred_region
          _
        $region24: #{tpu_custom_call.1} parent=11 // pred_fallthru
          _
        // Predicated region
        $region25: #{tpu_custom_call.1} parent=11 // pred_check
          %p364 = pneg %p168
        $region26: #{tpu_custom_call.1} parent=11 // pred_check_branch
          %366 = sbr.rel (%p364) target = $region28
        $region27: #{tpu_custom_call.1} parent=11 // pred_region
          _
        $region28: #{tpu_custom_call.1} parent=11 // pred_fallthru
          _
        // Predicated region
        $region29: #{tpu_custom_call.1} parent=11 // pred_check
          %p367 = pneg %p189
        $region30: #{tpu_custom_call.1} parent=11 // pred_check_branch
          %369 = sbr.rel (%p367) target = $region32
        $region31: #{tpu_custom_call.1} parent=11 // pred_region
          %s371 = ssub.s32 192, 192
          %372 = vsyncadd [#allocation10], %s371
          %s373 = sshll.u32 [#allocation9], 4
          %s374 = int_to_ptr.vmem [resolvable:$true] %s373
          %379 = dma.hbm_to_vmem [thread:$0]  %s6, 192, %s374, [#allocation10], 64, 64, 4
        $region32: #{tpu_custom_call.1} parent=11 // pred_fallthru
          _
        // Predicated region
        $region33: #{tpu_custom_call.1} parent=11 // pred_check
          %p380 = pneg %p210
        $region34: #{tpu_custom_call.1} parent=11 // pred_check_branch
          %382 = sbr.rel (%p380) target = $region36
        $region35: #{tpu_custom_call.1} parent=11 // pred_region
          %s384 = ssub.s32 16, 16
          %385 = vsyncadd [#allocation10], %s384
          %s387 = sshll.u32 [#allocation11], 4
          %s388 = int_to_ptr.vmem [resolvable:$true] %s387
          %390 = dma.hbm_to_vmem [thread:$0]  %s7, 16, %s388, [#allocation10]
        $region36: #{tpu_custom_call.1} parent=11 // pred_fallthru
          _
        // Predicated region
        $region37: #{tpu_custom_call.1} parent=11 // pred_check
          %p391 = pneg %p231
        $region38: #{tpu_custom_call.1} parent=11 // pred_check_branch
          %393 = sbr.rel (%p391) target = $region40
        $region39: #{tpu_custom_call.1} parent=11 // pred_region
          _
        $region40: #{tpu_custom_call.1} parent=11 // pred_fallthru
          _
        // Predicated region
        $region41: #{tpu_custom_call.1} parent=11 // pred_check
          %p394 = pneg %p252
        $region42: #{tpu_custom_call.1} parent=11 // pred_check_branch
          %396 = sbr.rel (%p394) target = $region44
        $region43: #{tpu_custom_call.1} parent=11 // pred_region
          _
        $region44: #{tpu_custom_call.1} parent=11 // pred_fallthru
          _
      $region12: #{tpu_custom_call.1} parent=5 // pred_fallthru
        _
      %p397 = scmp.lt.s32.totalorder %s32, 2
      // Predicated region
      $region45: #{tpu_custom_call.1} parent=5 // pred_check
        %p398 = pneg %p397
      $region46: #{tpu_custom_call.1} parent=5 // pred_check_branch
        %400 = sbr.rel (%p398) target = $region48
      $region47: #{tpu_custom_call.1} parent=5 // pred_region
        // Predicated region
        $region49: #{tpu_custom_call.1} parent=47 // pred_check
          %p401 = pneg %p52
        $region50: #{tpu_custom_call.1} parent=47 // pred_check_branch
          %403 = sbr.rel (%p401) target = $region52
        $region51: #{tpu_custom_call.1} parent=47 // pred_region
          %s404 = sand.u32 %s42, 1
          %s405 = scalar_lea.sflag [#allocation4], %s404
          %s406 = sand.u32 %s42, 1
          %s407 = smul.addr %s406, 8
          %s408 = scalar_lea.vmem [#allocation3], %s407
          %s410 = ssub.s32 128, 128
          %411 = vsyncadd %s405, %s410
          %s412 = smul.addr %s32, 128
          %s413 = scalar_lea.hbm %s0, %s412
          %s415 = sshll.u32 %s408, 4
          %s416 = int_to_ptr.vmem [resolvable:$true] %s415
          %418 = dma.hbm_to_vmem [thread:$0]  %s413, 128, %s416, %s405
        $region52: #{tpu_custom_call.1} parent=47 // pred_fallthru
          _
        // Predicated region
        $region53: #{tpu_custom_call.1} parent=47 // pred_check
          %p419 = pneg %p78
        $region54: #{tpu_custom_call.1} parent=47 // pred_check_branch
          %421 = sbr.rel (%p419) target = $region56
        $region55: #{tpu_custom_call.1} parent=47 // pred_region
          %s422 = sand.u32 %s32, 1
          %s423 = scalar_lea.sflag [#allocation7], %s422
          %s424 = sand.u32 %s68, 1
          %s425 = smul.addr %s424, 16
          %s426 = scalar_lea.vmem [#allocation6], %s425
          %s428 = ssub.s32 256, 256
          %429 = vsyncadd %s423, %s428
          %s430 = smul.addr %s32, 2
          %s431 = smul.addr %s430, 128
          %s432 = scalar_lea.hbm %s1, %s431
          %s433 = sshll.u32 %s426, 4
          %s434 = int_to_ptr.vmem [resolvable:$true] %s433
          %439 = dma.hbm_to_vmem [thread:$0]  %s432, 256, %s434, %s423, 128, 128, 8
        $region56: #{tpu_custom_call.1} parent=47 // pred_fallthru
          _
      $region48: #{tpu_custom_call.1} parent=5 // pred_fallthru
        _
      %p440 = scmp.le.s32.totalorder 1, %s32
      %p441 = scmp.lt.s32.totalorder %s32, 3
      %p442 = pnand %p440, %p441
      %p443 = pneg %p442
      // Predicated region
      $region57: #{tpu_custom_call.1} parent=5 // pred_check
        _
      $region58: #{tpu_custom_call.1} parent=5 // pred_check_branch
        %445 = sbr.rel (%p442) target = $region60
      $region59: #{tpu_custom_call.1} parent=5 // pred_region
        %s446 = ssub.s32 %s32, 1
        %s447 = sand.u32 %s45, 1
        %s448 = scalar_lea.sflag [#allocation4], %s447
        %s449 = sand.u32 %s45, 1
        %s450 = smul.addr %s449, 8
        %s451 = scalar_lea.vmem [#allocation3], %s450
        // Predicated region
        $region61: #{tpu_custom_call.1} parent=59 // pred_check
          %p452 = pneg %p58
        $region62: #{tpu_custom_call.1} parent=59 // pred_check_branch
          %454 = sbr.rel (%p452) target = $region64
        $region63: #{tpu_custom_call.1} parent=59 // pred_region
          %455 = dma.done %s448, 128
        $region64: #{tpu_custom_call.1} parent=59 // pred_fallthru
          _
        %s456 = sand.u32 %s37, 1
        %s457 = scalar_lea.sflag [#allocation7], %s456
        %s458 = sand.u32 %s71, 1
        %s459 = smul.addr %s458, 16
        %s460 = scalar_lea.vmem [#allocation6], %s459
        // Predicated region
        $region65: #{tpu_custom_call.1} parent=59 // pred_check
          %p461 = pneg %p84
        $region66: #{tpu_custom_call.1} parent=59 // pred_check_branch
          %463 = sbr.rel (%p461) target = $region68
        $region67: #{tpu_custom_call.1} parent=59 // pred_region
          %464 = dma.done %s457, 256
        $region68: #{tpu_custom_call.1} parent=59 // pred_fallthru
          _
        // Predicated region
        $region69: #{tpu_custom_call.1} parent=59 // pred_check
          %p465 = pneg %p105
        $region70: #{tpu_custom_call.1} parent=59 // pred_check_branch
          %467 = sbr.rel (%p465) target = $region72
        $region71: #{tpu_custom_call.1} parent=59 // pred_region
          %468 = dma.done [#allocation7], 256
        $region72: #{tpu_custom_call.1} parent=59 // pred_fallthru
          _
        // Predicated region
        $region73: #{tpu_custom_call.1} parent=59 // pred_check
          %p469 = pneg %p189
        $region74: #{tpu_custom_call.1} parent=59 // pred_check_branch
          %471 = sbr.rel (%p469) target = $region76
        $region75: #{tpu_custom_call.1} parent=59 // pred_region
          %472 = dma.done [#allocation10], 192
        $region76: #{tpu_custom_call.1} parent=59 // pred_fallthru
          _
        // Predicated region
        $region77: #{tpu_custom_call.1} parent=59 // pred_check
          %p473 = pneg %p210
        $region78: #{tpu_custom_call.1} parent=59 // pred_check_branch
          %475 = sbr.rel (%p473) target = $region80
        $region79: #{tpu_custom_call.1} parent=59 // pred_region
          %476 = dma.done [#allocation10], 16
        $region80: #{tpu_custom_call.1} parent=59 // pred_fallthru
          _
        %s477 = sand.u32 %s45, 1
        %s478 = scalar_lea.sflag [#allocation4], %s477
        %s479 = sand.u32 %s45, 1
        %s480 = smul.addr %s479, 8
        %s481 = scalar_lea.vmem [#allocation3], %s480
        %p482 = pneg %p58
        %p483 = pneg %p55
        %s484 = sand.u32 %s37, 1
        %s485 = scalar_lea.sflag [#allocation7], %s484
        %s486 = sand.u32 %s71, 1
        %s487 = smul.addr %s486, 16
        %s488 = scalar_lea.vmem [#allocation6], %s487
        %p489 = pneg %p84
        %p490 = pneg %p81
        %p491 = pneg %p105
        %p492 = pneg %p102
        %p493 = pneg %p126
        %p494 = pneg %p123
        %p495 = pneg %p147
        %p496 = pneg %p144
        %p497 = pneg %p168
        %p498 = pneg %p165
        %p499 = pneg %p189
        %p500 = pneg %p186
        %p501 = pneg %p210
        %p502 = pneg %p207
        %p503 = pneg %p231
        %p504 = pneg %p228
        %p505 = pneg %p252
        %p506 = pneg %p249
        %p507 = pneg %p278
        %p508 = pneg %p275
        %s509 = sand.u32 %s265, 1
        %s510 = scalar_lea.sflag [#allocation5], %s509
        %s511 = sand.u32 %s265, 1
        %s512 = smul.addr %s511, 8
        %s513 = scalar_lea.vmem [#allocation12], %s512
        %p514 = pneg %p304
        %p515 = pneg %p301
        %s516 = sand.u32 %s37, 1
        %s517 = scalar_lea.sflag [#allocation14], %s516
        %s518 = sand.u32 %s291, 1
        %s519 = smul.addr %s518, 8
        %s520 = scalar_lea.vmem [#allocation13], %s519
        %p521 = pneg %p330
        %p522 = pneg %p327
        %s523 = sand.u32 %s37, 1
        %s524 = scalar_lea.sflag [#allocation14], %s523
        %s525 = sand.u32 %s317, 1
        %s526 = smul.addr %s525, 8
        %s527 = scalar_lea.vmem [#allocation15], %s526
        %v529 = vld [vmem:[%s451] sm:$0xff]
        %v530 = vpack.c.bf16 %v529, %v529
        %v531 = vld [vmem:[%s460] sm:$0xff]
        %v532 = vld [vmem:[%s460 + $0x8] sm:$0xff]
        %v533 = vpack.c.bf16 %v532, %v531
        %v534 = vld [vmem:[#allocation8] sm:$0xf]
        %v535 = vld [vmem:[#allocation8 + $0x4] sm:$0xf]
        %v536 = vld [vmem:[#allocation8 + $0x8] sm:$0xf]
        %v537 = vld [vmem:[#allocation8 + $0xc] sm:$0xf]
        %v538 = vld [vmem:[%s3] sm:$0x1]
        %v540 = vlaneseq
        %v541 = vshrl.u32 %v540, 7
        %v542 = vsub.s32 0, %v541
        %v543 = vrot.slane %v538, %v542
        %v549 = vunpack.c.l.b16 %v534
        %v550 = vunpack.c.l.b16 %v535
        %v551 = vunpack.c.l.b16 %v536
        %v552 = vunpack.c.l.b16 %v537
        %v553 = vpack.c.b16 %v550, %v549
        %v554 = vpack.c.b16 %v552, %v551
        %vm557 = vcmask 261120
        %v559 = vsel %vm557, %v530, 0
        %561 = vmatprep.subr.bf16.mxu0 0
        %562 = vmatpush1.bf16.msra.mxu0 %v553
        %563 = vmatprep.subr.bf16.mxu0 0
        %564 = vmatpush1.bf16.msra.mxu0 %v554
        %565 = vmatprep.subr.bf16.mxu0 0
        %566 = vmatpush1.bf16.msra.mxu0 0
        %567 = vmatprep.subr.bf16.mxu0 0
        %568 = vmatpush1.bf16.msra.mxu0 0
        %569 = vmatprep.subr.bf16.mxu0 0
        %570 = vmatpush1.bf16.msra.mxu0 0
        %571 = vmatprep.subr.bf16.mxu0 0
        %572 = vmatpush1.bf16.msra.mxu0 0
        %573 = vmatprep.subr.bf16.mxu0 0
        %574 = vmatpush1.bf16.msra.mxu0 0
        %575 = vmatprep.subr.bf16.mxu0 0
        %576 = vmatpush1.bf16.msra.mxu0 0
        %577 = vmatprep.subr.bf16.mxu0 0
        %578 = vmatpush1.bf16.msra.mxu0 0
        %579 = vmatprep.subr.bf16.mxu0 0
        %580 = vmatpush1.bf16.msra.mxu0 0
        %581 = vmatprep.subr.bf16.mxu0 0
        %582 = vmatpush1.bf16.msra.mxu0 0
        %583 = vmatprep.subr.bf16.mxu0 0
        %584 = vmatpush1.bf16.msra.mxu0 0
        %585 = vmatprep.subr.bf16.mxu0 0
        %586 = vmatpush1.bf16.msra.mxu0 0
        %587 = vmatprep.subr.bf16.mxu0 0
        %588 = vmatpush1.bf16.msra.mxu0 0
        %589 = vmatprep.subr.bf16.mxu0 0
        %590 = vmatpush1.bf16.msra.mxu0 0
        %591 = vmatprep.subr.bf16.mxu0 0
        %592 = vmatpush1.bf16.msra.mxu0 0
        %593 = vmatprep.mubr.bf16.mxu0 0
        %594 = vmatmul.mubr.bf16.gmra.mrb[0].mxu0 %v559
        %v595 = vpop.f32.mrb[0].mxu0
        %v596 = vadd.f32 %v543, %v595
        %v597 = vpop.f32.mrb[0].mxu0
        %v598 = vpop.f32.mrb[0].mxu0
        %v599 = vpop.f32.mrb[0].mxu0
        %600 = vdwg.mxu0
        %v601 = vld [vmem:[%s4] sm:$0xf]
        %v602 = vld [vmem:[%s4 + $0x4] sm:$0xf]
        %v603 = vld [vmem:[%s4 + $0x8] sm:$0xf]
        %v604 = vld [vmem:[%s5] sm:$0x1]
        %v606 = vlaneseq
        %v607 = vshrl.u32 %v606, 7
        %v608 = vsub.s32 0, %v607
        %v609 = vrot.slane %v604, %v608
        %v614 = vunpack.c.l.b16 %v601
        %v615 = vunpack.c.l.b16 %v602
        %v616 = vunpack.c.l.b16 %v603
        %v617 = vpack.c.b16 %v615, %v614
        %v618 = vpack.c.b16 %v616, %v616
        %vm620 = vcmask 195584
        %v622 = vsel %vm620, %v533, 0
        %vm624 = vcmask 1043456
        %v626 = vsel %vm624, %v618, 0
        %628 = vmatprep.subr.bf16.mxu0 0
        %629 = vmatpush1.bf16.msra.mxu0 %v617
        %630 = vmatprep.subr.bf16.mxu0 0
        %631 = vmatpush1.bf16.msra.mxu0 %v626
        %632 = vmatprep.subr.bf16.mxu0 0
        %633 = vmatpush1.bf16.msra.mxu0 0
        %634 = vmatprep.subr.bf16.mxu0 0
        %635 = vmatpush1.bf16.msra.mxu0 0
        %636 = vmatprep.subr.bf16.mxu0 0
        %637 = vmatpush1.bf16.msra.mxu0 0
        %638 = vmatprep.subr.bf16.mxu0 0
        %639 = vmatpush1.bf16.msra.mxu0 0
        %640 = vmatprep.subr.bf16.mxu0 0
        %641 = vmatpush1.bf16.msra.mxu0 0
        %642 = vmatprep.subr.bf16.mxu0 0
        %643 = vmatpush1.bf16.msra.mxu0 0
        %644 = vmatprep.subr.bf16.mxu0 0
        %645 = vmatpush1.bf16.msra.mxu0 0
        %646 = vmatprep.subr.bf16.mxu0 0
        %647 = vmatpush1.bf16.msra.mxu0 0
        %648 = vmatprep.subr.bf16.mxu0 0
        %649 = vmatpush1.bf16.msra.mxu0 0
        %650 = vmatprep.subr.bf16.mxu0 0
        %651 = vmatpush1.bf16.msra.mxu0 0
        %652 = vmatprep.subr.bf16.mxu0 0
        %653 = vmatpush1.bf16.msra.mxu0 0
        %654 = vmatprep.subr.bf16.mxu0 0
        %655 = vmatpush1.bf16.msra.mxu0 0
        %656 = vmatprep.subr.bf16.mxu0 0
        %657 = vmatpush1.bf16.msra.mxu0 0
        %658 = vmatprep.subr.bf16.mxu0 0
        %659 = vmatpush1.bf16.msra.mxu0 0
        %660 = vmatprep.mubr.bf16.mxu0 0
        %661 = vmatmul.mubr.bf16.gmra.mrb[0].mxu0 %v622
        %v662 = vpop.f32.mrb[0].mxu0
        %v663 = vadd.f32 %v609, %v662
        %v664 = vpop.f32.mrb[0].mxu0
        %v665 = vpop.f32.mrb[0].mxu0
        %v666 = vadd.f32 %v609, %v665
        %v667 = vpop.f32.mrb[0].mxu0
        %668 = vdwg.mxu0
        %v669 = vld [vmem:[#allocation9] sm:$0xf]
        %v670 = vld [vmem:[#allocation9 + $0x4] sm:$0xf]
        %v671 = vld [vmem:[#allocation9 + $0x8] sm:$0xf]
        %v672 = vld [vmem:[#allocation11] sm:$0x1]
        %v674 = vlaneseq
        %v675 = vshrl.u32 %v674, 7
        %v676 = vsub.s32 0, %v675
        %v677 = vrot.slane %v672, %v676
        %v682 = vunpack.c.l.b16 %v669
        %v683 = vunpack.c.l.b16 %v670
        %v684 = vunpack.c.l.b16 %v671
        %v685 = vpack.c.b16 %v683, %v682
        %v686 = vpack.c.b16 %v684, %v684
        %v689 = vsel %vm624, %v686, 0
        %691 = vmatprep.subr.bf16.mxu0 0
        %692 = vmatpush1.bf16.msra.mxu0 %v685
        %693 = vmatprep.subr.bf16.mxu0 0
        %694 = vmatpush1.bf16.msra.mxu0 %v689
        %695 = vmatprep.subr.bf16.mxu0 0
        %696 = vmatpush1.bf16.msra.mxu0 0
        %697 = vmatprep.subr.bf16.mxu0 0
        %698 = vmatpush1.bf16.msra.mxu0 0
        %699 = vmatprep.subr.bf16.mxu0 0
        %700 = vmatpush1.bf16.msra.mxu0 0
        %701 = vmatprep.subr.bf16.mxu0 0
        %702 = vmatpush1.bf16.msra.mxu0 0
        %703 = vmatprep.subr.bf16.mxu0 0
        %704 = vmatpush1.bf16.msra.mxu0 0
        %705 = vmatprep.subr.bf16.mxu0 0
        %706 = vmatpush1.bf16.msra.mxu0 0
        %707 = vmatprep.subr.bf16.mxu0 0
        %708 = vmatpush1.bf16.msra.mxu0 0
        %709 = vmatprep.subr.bf16.mxu0 0
        %710 = vmatpush1.bf16.msra.mxu0 0
        %711 = vmatprep.subr.bf16.mxu0 0
        %712 = vmatpush1.bf16.msra.mxu0 0
        %713 = vmatprep.subr.bf16.mxu0 0
        %714 = vmatpush1.bf16.msra.mxu0 0
        %715 = vmatprep.subr.bf16.mxu0 0
        %716 = vmatpush1.bf16.msra.mxu0 0
        %717 = vmatprep.subr.bf16.mxu0 0
        %718 = vmatpush1.bf16.msra.mxu0 0
        %719 = vmatprep.subr.bf16.mxu0 0
        %720 = vmatpush1.bf16.msra.mxu0 0
        %721 = vmatprep.subr.bf16.mxu0 0
        %722 = vmatpush1.bf16.msra.mxu0 0
        %723 = vmatprep.mubr.bf16.mxu0 0
        %724 = vmatmul.mubr.bf16.gmra.mrb[0].mxu0 %v622
        %v725 = vpop.f32.mrb[0].mxu0
        %v726 = vadd.f32 %v677, %v725
        %v727 = vpop.f32.mrb[0].mxu0
        %v728 = vpop.f32.mrb[0].mxu0
        %v729 = vadd.f32 %v677, %v728
        %v730 = vpop.f32.mrb[0].mxu0
        %731 = vdwg.mxu0
        %v732 = vpack.c.bf16 %v666, %v663
        %v734 = vunpack.c.l.b16 %v732
        %v735 = vunpack.c.h.b16 %v732
        %v736 = vpack.c.b16 %v734, %v734
        %v737 = vpack.c.b16 %v735, %v735
        %vm740 = vcmask 257024
        %741 = vst.msk [vmem:[%s520] sm:$0xf] %vm740, %v736
        %742 = vst.msk [vmem:[%s520 + $0x4] sm:$0xf] %vm740, %v737
        %v743 = vpack.c.bf16 %v729, %v726
        %v745 = vunpack.c.l.b16 %v743
        %v746 = vunpack.c.h.b16 %v743
        %v747 = vpack.c.b16 %v745, %v745
        %v748 = vpack.c.b16 %v746, %v746
        %751 = vst.msk [vmem:[%s527] sm:$0xf] %vm740, %v747
        %752 = vst.msk [vmem:[%s527 + $0x4] sm:$0xf] %vm740, %v748
        %v753 = vpack.c.bf16 %v596, %v596
        %vm754 = vcmask 64512
        %v756 = vsel %vm754, %v753, 0
        %v759 = vsel %vm754, %v732, 0
        %761 = vmatprep.subr.bf16.mxu0 0
        %762 = vmatpush1.bf16.xpose.msra.mxu0 %v759
        %763 = vmatprep.subr.bf16.mxu0 0
        %764 = vmatpush1.bf16.xpose.msra.mxu0 0
        %765 = vmatprep.subr.bf16.mxu0 0
        %766 = vmatpush1.bf16.xpose.msra.mxu0 0
        %767 = vmatprep.subr.bf16.mxu0 0
        %768 = vmatpush1.bf16.xpose.msra.mxu0 0
        %769 = vmatprep.subr.bf16.mxu0 0
        %770 = vmatpush1.bf16.xpose.msra.mxu0 0
        %771 = vmatprep.subr.bf16.mxu0 0
        %772 = vmatpush1.bf16.xpose.msra.mxu0 0
        %773 = vmatprep.subr.bf16.mxu0 0
        %774 = vmatpush1.bf16.xpose.msra.mxu0 0
        %775 = vmatprep.subr.bf16.mxu0 0
        %776 = vmatpush1.bf16.xpose.msra.mxu0 0
        %777 = vmatprep.subr.bf16.mxu0 0
        %778 = vmatpush1.bf16.xpose.msra.mxu0 0
        %779 = vmatprep.subr.bf16.mxu0 0
        %780 = vmatpush1.bf16.xpose.msra.mxu0 0
        %781 = vmatprep.subr.bf16.mxu0 0
        %782 = vmatpush1.bf16.xpose.msra.mxu0 0
        %783 = vmatprep.subr.bf16.mxu0 0
        %784 = vmatpush1.bf16.xpose.msra.mxu0 0
        %785 = vmatprep.subr.bf16.mxu0 0
        %786 = vmatpush1.bf16.xpose.msra.mxu0 0
        %787 = vmatprep.subr.bf16.mxu0 0
        %788 = vmatpush1.bf16.xpose.msra.mxu0 0
        %789 = vmatprep.subr.bf16.mxu0 0
        %790 = vmatpush1.bf16.xpose.msra.mxu0 0
        %791 = vmatprep.subr.bf16.mxu0 0
        %792 = vmatpush1.bf16.xpose.msra.mxu0 0
        %793 = vmatprep.mubr.bf16.mxu0 0
        %794 = vmatmul.mubr.bf16.gmra.mrb[0].mxu0 %v756
        %v795 = vpop.f32.mrb[0].mxu0
        %v796 = vadd.f32 0.0, %v795
        %v797 = vpop.f32.mrb[0].mxu0
        %v798 = vpop.f32.mrb[0].mxu0
        %v799 = vpop.f32.mrb[0].mxu0
        %800 = vdwg.mxu0
        %vm801 = vcmask 130048
        %v802 = vsel %vm801, %v796, -inf
        %803 = vmax.xlane.f32.xlu0 %v802
        %v804 = vpop.xlane.xlu0 %803
        %v805 = vsub.f32 %v796, %v804
        %v806 = vmul.f32 %v805, 1.442695
        %v807 = vpow.pop %v806
        %v808 = vsel %vm801, %v807, 0.0
        %809 = vadd.xlane.f32.xlu0 %v808
        %v810 = vpop.xlane.xlu0 %809
        %v811 = vrcp.pop %v810
        %v812 = vmul.f32 %v807, %v811
        %v813 = vpack.c.bf16 %v812, %v812
        %v815 = vsel %vm801, %v813, 0
        %817 = vmatprep.subr.bf16.mxu0 0
        %818 = vmatpush1.bf16.msra.mxu0 %v743
        %819 = vmatprep.subr.bf16.mxu0 0
        %820 = vmatpush1.bf16.msra.mxu0 0
        %821 = vmatprep.subr.bf16.mxu0 0
        %822 = vmatpush1.bf16.msra.mxu0 0
        %823 = vmatprep.subr.bf16.mxu0 0
        %824 = vmatpush1.bf16.msra.mxu0 0
        %825 = vmatprep.subr.bf16.mxu0 0
        %826 = vmatpush1.bf16.msra.mxu0 0
        %827 = vmatprep.subr.bf16.mxu0 0
        %828 = vmatpush1.bf16.msra.mxu0 0
        %829 = vmatprep.subr.bf16.mxu0 0
        %830 = vmatpush1.bf16.msra.mxu0 0
        %831 = vmatprep.subr.bf16.mxu0 0
        %832 = vmatpush1.bf16.msra.mxu0 0
        %833 = vmatprep.subr.bf16.mxu0 0
        %834 = vmatpush1.bf16.msra.mxu0 0
        %835 = vmatprep.subr.bf16.mxu0 0
        %836 = vmatpush1.bf16.msra.mxu0 0
        %837 = vmatprep.subr.bf16.mxu0 0
        %838 = vmatpush1.bf16.msra.mxu0 0
        %839 = vmatprep.subr.bf16.mxu0 0
        %840 = vmatpush1.bf16.msra.mxu0 0
        %841 = vmatprep.subr.bf16.mxu0 0
        %842 = vmatpush1.bf16.msra.mxu0 0
        %843 = vmatprep.subr.bf16.mxu0 0
        %844 = vmatpush1.bf16.msra.mxu0 0
        %845 = vmatprep.subr.bf16.mxu0 0
        %846 = vmatpush1.bf16.msra.mxu0 0
        %847 = vmatprep.subr.bf16.mxu0 0
        %848 = vmatpush1.bf16.msra.mxu0 0
        %849 = vmatprep.mubr.bf16.mxu0 0
        %850 = vmatmul.mubr.bf16.gmra.mrb[0].mxu0 %v815
        %v851 = vpop.f32.mrb[0].mxu0
        %v852 = vadd.f32 0.0, %v851
        %v853 = vpop.f32.mrb[0].mxu0
        %v854 = vpop.f32.mrb[0].mxu0
        %v855 = vpop.f32.mrb[0].mxu0
        %856 = vdwg.mxu0
        %v857 = vpack.c.bf16 %v852, %v852
        %vm858 = vcmask 60416
        %859 = vst.msk [vmem:[#allocation2] sm:$0xf] %vm858, %v857
        %861 = vrot.lane.b32.xlu0 %v753, 120
        %v862 = vpop.permute.xlu0 %861
        %863 = vrot.lane.b32.xlu0 %v732, 120
        %v864 = vpop.permute.xlu0 %863
        %v866 = vsel %vm754, %v862, 0
        %v869 = vsel %vm754, %v864, 0
        %871 = vmatprep.subr.bf16.mxu0 0
        %872 = vmatpush1.bf16.xpose.msra.mxu0 %v869
        %873 = vmatprep.subr.bf16.mxu0 0
        %874 = vmatpush1.bf16.xpose.msra.mxu0 0
        %875 = vmatprep.subr.bf16.mxu0 0
        %876 = vmatpush1.bf16.xpose.msra.mxu0 0
        %877 = vmatprep.subr.bf16.mxu0 0
        %878 = vmatpush1.bf16.xpose.msra.mxu0 0
        %879 = vmatprep.subr.bf16.mxu0 0
        %880 = vmatpush1.bf16.xpose.msra.mxu0 0
        %881 = vmatprep.subr.bf16.mxu0 0
        %882 = vmatpush1.bf16.xpose.msra.mxu0 0
        %883 = vmatprep.subr.bf16.mxu0 0
        %884 = vmatpush1.bf16.xpose.msra.mxu0 0
        %885 = vmatprep.subr.bf16.mxu0 0
        %886 = vmatpush1.bf16.xpose.msra.mxu0 0
        %887 = vmatprep.subr.bf16.mxu0 0
        %888 = vmatpush1.bf16.xpose.msra.mxu0 0
        %889 = vmatprep.subr.bf16.mxu0 0
        %890 = vmatpush1.bf16.xpose.msra.mxu0 0
        %891 = vmatprep.subr.bf16.mxu0 0
        %892 = vmatpush1.bf16.xpose.msra.mxu0 0
        %893 = vmatprep.subr.bf16.mxu0 0
        %894 = vmatpush1.bf16.xpose.msra.mxu0 0
        %895 = vmatprep.subr.bf16.mxu0 0
        %896 = vmatpush1.bf16.xpose.msra.mxu0 0
        %897 = vmatprep.subr.bf16.mxu0 0
        %898 = vmatpush1.bf16.xpose.msra.mxu0 0
        %899 = vmatprep.subr.bf16.mxu0 0
        %900 = vmatpush1.bf16.xpose.msra.mxu0 0
        %901 = vmatprep.subr.bf16.mxu0 0
        %902 = vmatpush1.bf16.xpose.msra.mxu0 0
        %903 = vmatprep.mubr.bf16.mxu0 0
        %904 = vmatmul.mubr.bf16.gmra.mrb[0].mxu0 %v866
        %v905 = vpop.f32.mrb[0].mxu0
        %v906 = vadd.f32 0.0, %v905
        %v907 = vpop.f32.mrb[0].mxu0
        %v908 = vpop.f32.mrb[0].mxu0
        %v909 = vpop.f32.mrb[0].mxu0
        %910 = vdwg.mxu0
        %v911 = vsel %vm801, %v906, -inf
        %912 = vmax.xlane.f32.xlu0 %v911
        %v913 = vpop.xlane.xlu0 %912
        %v914 = vsub.f32 %v906, %v913
        %v915 = vmul.f32 %v914, 1.442695
        %v916 = vpow.pop %v915
        %v917 = vsel %vm801, %v916, 0.0
        %918 = vadd.xlane.f32.xlu0 %v917
        %v919 = vpop.xlane.xlu0 %918
        %v920 = vrcp.pop %v919
        %v921 = vmul.f32 %v916, %v920
        %v922 = vpack.c.bf16 %v921, %v921
        %923 = vrot.lane.b32.xlu0 %v743, 120
        %v924 = vpop.permute.xlu0 %923
        %v927 = vsel %vm801, %v922, 0
        %929 = vmatprep.subr.bf16.mxu0 0
        %930 = vmatpush1.bf16.msra.mxu0 %v924
        %931 = vmatprep.subr.bf16.mxu0 0
        %932 = vmatpush1.bf16.msra.mxu0 0
        %933 = vmatprep.subr.bf16.mxu0 0
        %934 = vmatpush1.bf16.msra.mxu0 0
        %935 = vmatprep.subr.bf16.mxu0 0
        %936 = vmatpush1.bf16.msra.mxu0 0
        %937 = vmatprep.subr.bf16.mxu0 0
        %938 = vmatpush1.bf16.msra.mxu0 0
        %939 = vmatprep.subr.bf16.mxu0 0
        %940 = vmatpush1.bf16.msra.mxu0 0
        %941 = vmatprep.subr.bf16.mxu0 0
        %942 = vmatpush1.bf16.msra.mxu0 0
        %943 = vmatprep.subr.bf16.mxu0 0
        %944 = vmatpush1.bf16.msra.mxu0 0
        %945 = vmatprep.subr.bf16.mxu0 0
        %946 = vmatpush1.bf16.msra.mxu0 0
        %947 = vmatprep.subr.bf16.mxu0 0
        %948 = vmatpush1.bf16.msra.mxu0 0
        %949 = vmatprep.subr.bf16.mxu0 0
        %950 = vmatpush1.bf16.msra.mxu0 0
        %951 = vmatprep.subr.bf16.mxu0 0
        %952 = vmatpush1.bf16.msra.mxu0 0
        %953 = vmatprep.subr.bf16.mxu0 0
        %954 = vmatpush1.bf16.msra.mxu0 0
        %955 = vmatprep.subr.bf16.mxu0 0
        %956 = vmatpush1.bf16.msra.mxu0 0
        %957 = vmatprep.subr.bf16.mxu0 0
        %958 = vmatpush1.bf16.msra.mxu0 0
        %959 = vmatprep.subr.bf16.mxu0 0
        %960 = vmatpush1.bf16.msra.mxu0 0
        %961 = vmatprep.mubr.bf16.mxu0 0
        %962 = vmatmul.mubr.bf16.gmra.mrb[0].mxu0 %v927
        %v963 = vpop.f32.mrb[0].mxu0
        %v964 = vadd.f32 0.0, %v963
        %v965 = vpop.f32.mrb[0].mxu0
        %v966 = vpop.f32.mrb[0].mxu0
        %v967 = vpop.f32.mrb[0].mxu0
        %968 = vdwg.mxu0
        %v969 = vpack.c.bf16 %v964, %v964
        %v971 = vunpack.c.l.b16 %v969
        %v972 = vpack.c.b16 %v971, %v971
        %973 = vrot.lane.b32.xlu0 %v972, 8
        %v974 = vpop.permute.xlu0 %973
        %vm976 = vcmask 126016
        %977 = vst.msk [vmem:[#allocation2] sm:$0xf] %vm976, %v974
        %978 = vrot.lane.b32.xlu0 %v753, 112
        %v979 = vpop.permute.xlu0 %978
        %980 = vrot.lane.b32.xlu0 %v732, 112
        %v981 = vpop.permute.xlu0 %980
        %v983 = vsel %vm754, %v979, 0
        %v986 = vsel %vm754, %v981, 0
        %988 = vmatprep.subr.bf16.mxu0 0
        %989 = vmatpush1.bf16.xpose.msra.mxu0 %v986
        %990 = vmatprep.subr.bf16.mxu0 0
        %991 = vmatpush1.bf16.xpose.msra.mxu0 0
        %992 = vmatprep.subr.bf16.mxu0 0
        %993 = vmatpush1.bf16.xpose.msra.mxu0 0
        %994 = vmatprep.subr.bf16.mxu0 0
        %995 = vmatpush1.bf16.xpose.msra.mxu0 0
        %996 = vmatprep.subr.bf16.mxu0 0
        %997 = vmatpush1.bf16.xpose.msra.mxu0 0
        %998 = vmatprep.subr.bf16.mxu0 0
        %999 = vmatpush1.bf16.xpose.msra.mxu0 0
        %1000 = vmatprep.subr.bf16.mxu0 0
        %1001 = vmatpush1.bf16.xpose.msra.mxu0 0
        %1002 = vmatprep.subr.bf16.mxu0 0
        %1003 = vmatpush1.bf16.xpose.msra.mxu0 0
        %1004 = vmatprep.subr.bf16.mxu0 0
        %1005 = vmatpush1.bf16.xpose.msra.mxu0 0
        %1006 = vmatprep.subr.bf16.mxu0 0
        %1007 = vmatpush1.bf16.xpose.msra.mxu0 0
        %1008 = vmatprep.subr.bf16.mxu0 0
        %1009 = vmatpush1.bf16.xpose.msra.mxu0 0
        %1010 = vmatprep.subr.bf16.mxu0 0
        %1011 = vmatpush1.bf16.xpose.msra.mxu0 0
        %1012 = vmatprep.subr.bf16.mxu0 0
        %1013 = vmatpush1.bf16.xpose.msra.mxu0 0
        %1014 = vmatprep.subr.bf16.mxu0 0
        %1015 = vmatpush1.bf16.xpose.msra.mxu0 0
        %1016 = vmatprep.subr.bf16.mxu0 0
        %1017 = vmatpush1.bf16.xpose.msra.mxu0 0
        %1018 = vmatprep.subr.bf16.mxu0 0
        %1019 = vmatpush1.bf16.xpose.msra.mxu0 0
        %1020 = vmatprep.mubr.bf16.mxu0 0
        %1021 = vmatmul.mubr.bf16.gmra.mrb[0].mxu0 %v983
        %v1022 = vpop.f32.mrb[0].mxu0
        %v1023 = vadd.f32 0.0, %v1022
        %v1024 = vpop.f32.mrb[0].mxu0
        %v1025 = vpop.f32.mrb[0].mxu0
        %v1026 = vpop.f32.mrb[0].mxu0
        %1027 = vdwg.mxu0
        %v1028 = vsel %vm801, %v1023, -inf
        %1029 = vmax.xlane.f32.xlu0 %v1028
        %v1030 = vpop.xlane.xlu0 %1029
        %v1031 = vsub.f32 %v1023, %v1030
        %v1032 = vmul.f32 %v1031, 1.442695
        %v1033 = vpow.pop %v1032
        %v1034 = vsel %vm801, %v1033, 0.0
        %1035 = vadd.xlane.f32.xlu0 %v1034
        %v1036 = vpop.xlane.xlu0 %1035
        %v1037 = vrcp.pop %v1036
        %v1038 = vmul.f32 %v1033, %v1037
        %v1039 = vpack.c.bf16 %v1038, %v1038
        %1040 = vrot.lane.b32.xlu0 %v743, 112
        %v1041 = vpop.permute.xlu0 %1040
        %v1044 = vsel %vm801, %v1039, 0
        %1046 = vmatprep.subr.bf16.mxu0 0
        %1047 = vmatpush1.bf16.msra.mxu0 %v1041
        %1048 = vmatprep.subr.bf16.mxu0 0
        %1049 = vmatpush1.bf16.msra.mxu0 0
        %1050 = vmatprep.subr.bf16.mxu0 0
        %1051 = vmatpush1.bf16.msra.mxu0 0
        %1052 = vmatprep.subr.bf16.mxu0 0
        %1053 = vmatpush1.bf16.msra.mxu0 0
        %1054 = vmatprep.subr.bf16.mxu0 0
        %1055 = vmatpush1.bf16.msra.mxu0 0
        %1056 = vmatprep.subr.bf16.mxu0 0
        %1057 = vmatpush1.bf16.msra.mxu0 0
        %1058 = vmatprep.subr.bf16.mxu0 0
        %1059 = vmatpush1.bf16.msra.mxu0 0
        %1060 = vmatprep.subr.bf16.mxu0 0
        %1061 = vmatpush1.bf16.msra.mxu0 0
        %1062 = vmatprep.subr.bf16.mxu0 0
        %1063 = vmatpush1.bf16.msra.mxu0 0
        %1064 = vmatprep.subr.bf16.mxu0 0
        %1065 = vmatpush1.bf16.msra.mxu0 0
        %1066 = vmatprep.subr.bf16.mxu0 0
        %1067 = vmatpush1.bf16.msra.mxu0 0
        %1068 = vmatprep.subr.bf16.mxu0 0
        %1069 = vmatpush1.bf16.msra.mxu0 0
        %1070 = vmatprep.subr.bf16.mxu0 0
        %1071 = vmatpush1.bf16.msra.mxu0 0
        %1072 = vmatprep.subr.bf16.mxu0 0
        %1073 = vmatpush1.bf16.msra.mxu0 0
        %1074 = vmatprep.subr.bf16.mxu0 0
        %1075 = vmatpush1.bf16.msra.mxu0 0
        %1076 = vmatprep.subr.bf16.mxu0 0
        %1077 = vmatpush1.bf16.msra.mxu0 0
        %1078 = vmatprep.mubr.bf16.mxu0 0
        %1079 = vmatmul.mubr.bf16.gmra.mrb[0].mxu0 %v1044
        %v1080 = vpop.f32.mrb[0].mxu0
        %v1081 = vadd.f32 0.0, %v1080
        %v1082 = vpop.f32.mrb[0].mxu0
        %v1083 = vpop.f32.mrb[0].mxu0
        %v1084 = vpop.f32.mrb[0].mxu0
        %1085 = vdwg.mxu0
        %v1086 = vpack.c.bf16 %v1081, %v1081
        %v1088 = vunpack.c.l.b16 %v1086
        %v1089 = vpack.c.b16 %v1088, %v1088
        %1090 = vrot.lane.b32.xlu0 %v1089, 16
        %v1091 = vpop.permute.xlu0 %1090
        %vm1093 = vcmask 191616
        %1094 = vst.msk [vmem:[#allocation2] sm:$0xf] %vm1093, %v1091
        %1095 = vrot.lane.b32.xlu0 %v753, 104
        %v1096 = vpop.permute.xlu0 %1095
        %1097 = vrot.lane.b32.xlu0 %v732, 104
        %v1098 = vpop.permute.xlu0 %1097
        %v1100 = vsel %vm754, %v1096, 0
        %v1103 = vsel %vm754, %v1098, 0
        %1105 = vmatprep.subr.bf16.mxu0 0
        %1106 = vmatpush1.bf16.xpose.msra.mxu0 %v1103
        %1107 = vmatprep.subr.bf16.mxu0 0
        %1108 = vmatpush1.bf16.xpose.msra.mxu0 0
        %1109 = vmatprep.subr.bf16.mxu0 0
        %1110 = vmatpush1.bf16.xpose.msra.mxu0 0
        %1111 = vmatprep.subr.bf16.mxu0 0
        %1112 = vmatpush1.bf16.xpose.msra.mxu0 0
        %1113 = vmatprep.subr.bf16.mxu0 0
        %1114 = vmatpush1.bf16.xpose.msra.mxu0 0
        %1115 = vmatprep.subr.bf16.mxu0 0
        %1116 = vmatpush1.bf16.xpose.msra.mxu0 0
        %1117 = vmatprep.subr.bf16.mxu0 0
        %1118 = vmatpush1.bf16.xpose.msra.mxu0 0
        %1119 = vmatprep.subr.bf16.mxu0 0
        %1120 = vmatpush1.bf16.xpose.msra.mxu0 0
        %1121 = vmatprep.subr.bf16.mxu0 0
        %1122 = vmatpush1.bf16.xpose.msra.mxu0 0
        %1123 = vmatprep.subr.bf16.mxu0 0
        %1124 = vmatpush1.bf16.xpose.msra.mxu0 0
        %1125 = vmatprep.subr.bf16.mxu0 0
        %1126 = vmatpush1.bf16.xpose.msra.mxu0 0
        %1127 = vmatprep.subr.bf16.mxu0 0
        %1128 = vmatpush1.bf16.xpose.msra.mxu0 0
        %1129 = vmatprep.subr.bf16.mxu0 0
        %1130 = vmatpush1.bf16.xpose.msra.mxu0 0
        %1131 = vmatprep.subr.bf16.mxu0 0
        %1132 = vmatpush1.bf16.xpose.msra.mxu0 0
        %1133 = vmatprep.subr.bf16.mxu0 0
        %1134 = vmatpush1.bf16.xpose.msra.mxu0 0
        %1135 = vmatprep.subr.bf16.mxu0 0
        %1136 = vmatpush1.bf16.xpose.msra.mxu0 0
        %1137 = vmatprep.mubr.bf16.mxu0 0
        %1138 = vmatmul.mubr.bf16.gmra.mrb[0].mxu0 %v1100
        %v1139 = vpop.f32.mrb[0].mxu0
        %v1140 = vadd.f32 0.0, %v1139
        %v1141 = vpop.f32.mrb[0].mxu0
        %v1142 = vpop.f32.mrb[0].mxu0
        %v1143 = vpop.f32.mrb[0].mxu0
        %1144 = vdwg.mxu0
        %v1145 = vsel %vm801, %v1140, -inf
        %1146 = vmax.xlane.f32.xlu0 %v1145
        %v1147 = vpop.xlane.xlu0 %1146
        %v1148 = vsub.f32 %v1140, %v1147
        %v1149 = vmul.f32 %v1148, 1.442695
        %v1150 = vpow.pop %v1149
        %v1151 = vsel %vm801, %v1150, 0.0
        %1152 = vadd.xlane.f32.xlu0 %v1151
        %v1153 = vpop.xlane.xlu0 %1152
        %v1154 = vrcp.pop %v1153
        %v1155 = vmul.f32 %v1150, %v1154
        %v1156 = vpack.c.bf16 %v1155, %v1155
        %1157 = vrot.lane.b32.xlu0 %v743, 104
        %v1158 = vpop.permute.xlu0 %1157
        %v1161 = vsel %vm801, %v1156, 0
        %1163 = vmatprep.subr.bf16.mxu0 0
        %1164 = vmatpush1.bf16.msra.mxu0 %v1158
        %1165 = vmatprep.subr.bf16.mxu0 0
        %1166 = vmatpush1.bf16.msra.mxu0 0
        %1167 = vmatprep.subr.bf16.mxu0 0
        %1168 = vmatpush1.bf16.msra.mxu0 0
        %1169 = vmatprep.subr.bf16.mxu0 0
        %1170 = vmatpush1.bf16.msra.mxu0 0
        %1171 = vmatprep.subr.bf16.mxu0 0
        %1172 = vmatpush1.bf16.msra.mxu0 0
        %1173 = vmatprep.subr.bf16.mxu0 0
        %1174 = vmatpush1.bf16.msra.mxu0 0
        %1175 = vmatprep.subr.bf16.mxu0 0
        %1176 = vmatpush1.bf16.msra.mxu0 0
        %1177 = vmatprep.subr.bf16.mxu0 0
        %1178 = vmatpush1.bf16.msra.mxu0 0
        %1179 = vmatprep.subr.bf16.mxu0 0
        %1180 = vmatpush1.bf16.msra.mxu0 0
        %1181 = vmatprep.subr.bf16.mxu0 0
        %1182 = vmatpush1.bf16.msra.mxu0 0
        %1183 = vmatprep.subr.bf16.mxu0 0
        %1184 = vmatpush1.bf16.msra.mxu0 0
        %1185 = vmatprep.subr.bf16.mxu0 0
        %1186 = vmatpush1.bf16.msra.mxu0 0
        %1187 = vmatprep.subr.bf16.mxu0 0
        %1188 = vmatpush1.bf16.msra.mxu0 0
        %1189 = vmatprep.subr.bf16.mxu0 0
        %1190 = vmatpush1.bf16.msra.mxu0 0
        %1191 = vmatprep.subr.bf16.mxu0 0
        %1192 = vmatpush1.bf16.msra.mxu0 0
        %1193 = vmatprep.subr.bf16.mxu0 0
        %1194 = vmatpush1.bf16.msra.mxu0 0
        %1195 = vmatprep.mubr.bf16.mxu0 0
        %1196 = vmatmul.mubr.bf16.gmra.mrb[0].mxu0 %v1161
        %v1197 = vpop.f32.mrb[0].mxu0
        %v1198 = vadd.f32 0.0, %v1197
        %v1199 = vpop.f32.mrb[0].mxu0
        %v1200 = vpop.f32.mrb[0].mxu0
        %v1201 = vpop.f32.mrb[0].mxu0
        %1202 = vdwg.mxu0
        %v1203 = vpack.c.bf16 %v1198, %v1198
        %v1205 = vunpack.c.l.b16 %v1203
        %v1206 = vpack.c.b16 %v1205, %v1205
        %1207 = vrot.lane.b32.xlu0 %v1206, 24
        %v1208 = vpop.permute.xlu0 %1207
        %vm1210 = vcmask 257216
        %1211 = vst.msk [vmem:[#allocation2] sm:$0xf] %vm1210, %v1208
        %v1212 = vld [vmem:[#allocation2] sm:$0xf]
        %v1213 = vld [vmem:[%s8] sm:$0xf]
        %v1214 = vld [vmem:[%s8 + $0x4] sm:$0xf]
        %v1215 = vld [vmem:[%s8 + $0x8] sm:$0xf]
        %v1216 = vld [vmem:[%s8 + $0xc] sm:$0xf]
        %v1217 = vld [vmem:[%s9] sm:$0x1]
        %v1219 = vlaneseq
        %v1220 = vshrl.u32 %v1219, 7
        %v1221 = vsub.s32 0, %v1220
        %v1222 = vrot.slane %v1217, %v1221
        %v1228 = vunpack.c.l.b16 %v1213
        %v1229 = vunpack.c.l.b16 %v1214
        %v1230 = vunpack.c.l.b16 %v1215
        %v1231 = vunpack.c.l.b16 %v1216
        %v1232 = vpack.c.b16 %v1229, %v1228
        %v1233 = vpack.c.b16 %v1231, %v1230
        %v1237 = vsel %vm557, %v1212, 0
        %1239 = vmatprep.subr.bf16.mxu0 0
        %1240 = vmatpush1.bf16.msra.mxu0 %v1232
        %1241 = vmatprep.subr.bf16.mxu0 0
        %1242 = vmatpush1.bf16.msra.mxu0 %v1233
        %1243 = vmatprep.subr.bf16.mxu0 0
        %1244 = vmatpush1.bf16.msra.mxu0 0
        %1245 = vmatprep.subr.bf16.mxu0 0
        %1246 = vmatpush1.bf16.msra.mxu0 0
        %1247 = vmatprep.subr.bf16.mxu0 0
        %1248 = vmatpush1.bf16.msra.mxu0 0
        %1249 = vmatprep.subr.bf16.mxu0 0
        %1250 = vmatpush1.bf16.msra.mxu0 0
        %1251 = vmatprep.subr.bf16.mxu0 0
        %1252 = vmatpush1.bf16.msra.mxu0 0
        %1253 = vmatprep.subr.bf16.mxu0 0
        %1254 = vmatpush1.bf16.msra.mxu0 0
        %1255 = vmatprep.subr.bf16.mxu0 0
        %1256 = vmatpush1.bf16.msra.mxu0 0
        %1257 = vmatprep.subr.bf16.mxu0 0
        %1258 = vmatpush1.bf16.msra.mxu0 0
        %1259 = vmatprep.subr.bf16.mxu0 0
        %1260 = vmatpush1.bf16.msra.mxu0 0
        %1261 = vmatprep.subr.bf16.mxu0 0
        %1262 = vmatpush1.bf16.msra.mxu0 0
        %1263 = vmatprep.subr.bf16.mxu0 0
        %1264 = vmatpush1.bf16.msra.mxu0 0
        %1265 = vmatprep.subr.bf16.mxu0 0
        %1266 = vmatpush1.bf16.msra.mxu0 0
        %1267 = vmatprep.subr.bf16.mxu0 0
        %1268 = vmatpush1.bf16.msra.mxu0 0
        %1269 = vmatprep.subr.bf16.mxu0 0
        %1270 = vmatpush1.bf16.msra.mxu0 0
        %1271 = vmatprep.mubr.bf16.mxu0 0
        %1272 = vmatmul.mubr.bf16.gmra.mrb[0].mxu0 %v1237
        %v1273 = vpop.f32.mrb[0].mxu0
        %v1274 = vadd.f32 %v1222, %v1273
        %v1275 = vpop.f32.mrb[0].mxu0
        %v1276 = vpop.f32.mrb[0].mxu0
        %v1277 = vpop.f32.mrb[0].mxu0
        %1278 = vdwg.mxu0
        %1279 = vst.msk [vmem:[%s513] sm:$0xff] %vm557, %v1274
        %s1280 = sand.u32 %s265, 1
        %s1281 = scalar_lea.sflag [#allocation5], %s1280
        %s1282 = sand.u32 %s265, 1
        %s1283 = smul.addr %s1282, 8
        %s1284 = scalar_lea.vmem [#allocation12], %s1283
        %s1285 = sand.u32 %s37, 1
        %s1286 = scalar_lea.sflag [#allocation14], %s1285
        %s1287 = sand.u32 %s291, 1
        %s1288 = smul.addr %s1287, 8
        %s1289 = scalar_lea.vmem [#allocation13], %s1288
        %s1290 = sand.u32 %s37, 1
        %s1291 = scalar_lea.sflag [#allocation14], %s1290
        %s1292 = sand.u32 %s317, 1
        %s1293 = smul.addr %s1292, 8
        %s1294 = scalar_lea.vmem [#allocation15], %s1293
        // Predicated region
        $region81: #{tpu_custom_call.1} parent=59 // pred_check
          %p1295 = pneg %p275
        $region82: #{tpu_custom_call.1} parent=59 // pred_check_branch
          %1297 = sbr.rel (%p1295) target = $region84
        $region83: #{tpu_custom_call.1} parent=59 // pred_region
          %s1299 = ssub.s32 128, 128
          %1300 = vsyncadd %s1281, %s1299
          %s1301 = smul.addr %s37, 128
          %s1302 = scalar_lea.hbm %s10, %s1301
          %s1304 = sshll.u32 %s1284, 4
          %s1305 = int_to_ptr.vmem [resolvable:$true] %s1304
          %1307 = dma.vmem_to_hbm [thread:$0]  %s1305, 128, %s1302, %s1281
        $region84: #{tpu_custom_call.1} parent=59 // pred_fallthru
          _
        // Predicated region
        $region85: #{tpu_custom_call.1} parent=59 // pred_check
          %p1308 = pneg %p301
        $region86: #{tpu_custom_call.1} parent=59 // pred_check_branch
          %1310 = sbr.rel (%p1308) target = $region88
        $region87: #{tpu_custom_call.1} parent=59 // pred_region
          %s1312 = ssub.s32 128, 128
          %1313 = vsyncadd %s1286, %s1312
          %s1314 = smul.addr %s37, 2
          %s1315 = smul.addr %s1314, 64
          %s1316 = scalar_lea.hbm %s11, %s1315
          %s1317 = sshll.u32 %s1289, 4
          %s1318 = int_to_ptr.vmem [resolvable:$true] %s1317
          %1323 = dma.vmem_to_hbm [thread:$0]  %s1318, 128, %s1316, %s1286, 64, 64, 4
        $region88: #{tpu_custom_call.1} parent=59 // pred_fallthru
          _
        // Predicated region
        $region89: #{tpu_custom_call.1} parent=59 // pred_check
          %p1324 = pneg %p327
        $region90: #{tpu_custom_call.1} parent=59 // pred_check_branch
          %1326 = sbr.rel (%p1324) target = $region92
        $region91: #{tpu_custom_call.1} parent=59 // pred_region
          %s1328 = ssub.s32 128, 128
          %1329 = vsyncadd %s1291, %s1328
          %s1330 = smul.addr %s37, 2
          %s1331 = smul.addr %s1330, 64
          %s1332 = scalar_lea.hbm %s12, %s1331
          %s1333 = sshll.u32 %s1294, 4
          %s1334 = int_to_ptr.vmem [resolvable:$true] %s1333
          %1339 = dma.vmem_to_hbm [thread:$0]  %s1334, 128, %s1332, %s1291, 64, 64, 4
        $region92: #{tpu_custom_call.1} parent=59 // pred_fallthru
          _
      $region60: #{tpu_custom_call.1} parent=5 // pred_fallthru
        _
      %p1340 = scmp.le.s32.totalorder 2, %s32
      // Predicated region
      $region93: #{tpu_custom_call.1} parent=5 // pred_check
        %p1341 = pneg %p1340
      $region94: #{tpu_custom_call.1} parent=5 // pred_check_branch
        %1343 = sbr.rel (%p1341) target = $region96
      $region95: #{tpu_custom_call.1} parent=5 // pred_region
        %s1344 = ssub.s32 %s32, 2
        // Predicated region
        $region97: #{tpu_custom_call.1} parent=95 // pred_check
          %p1345 = pneg %p281
        $region98: #{tpu_custom_call.1} parent=95 // pred_check_branch
          %1347 = sbr.rel (%p1345) target = $region100
        $region99: #{tpu_custom_call.1} parent=95 // pred_region
          %s1348 = sand.u32 %s266, 1
          %s1349 = scalar_lea.sflag [#allocation5], %s1348
          %s1350 = sand.u32 %s266, 1
          %s1351 = smul.addr %s1350, 8
          %s1352 = scalar_lea.vmem [#allocation12], %s1351
          %1353 = dma.done %s1349, 128
        $region100: #{tpu_custom_call.1} parent=95 // pred_fallthru
          _
        // Predicated region
        $region101: #{tpu_custom_call.1} parent=95 // pred_check
          %p1354 = pneg %p307
        $region102: #{tpu_custom_call.1} parent=95 // pred_check_branch
          %1356 = sbr.rel (%p1354) target = $region104
        $region103: #{tpu_custom_call.1} parent=95 // pred_region
          %s1357 = sand.u32 %s38, 1
          %s1358 = scalar_lea.sflag [#allocation14], %s1357
          %s1359 = sand.u32 %s292, 1
          %s1360 = smul.addr %s1359, 8
          %s1361 = scalar_lea.vmem [#allocation13], %s1360
          %1362 = dma.done %s1358, 128
        $region104: #{tpu_custom_call.1} parent=95 // pred_fallthru
          _
        // Predicated region
        $region105: #{tpu_custom_call.1} parent=95 // pred_check
          %p1363 = pneg %p333
        $region106: #{tpu_custom_call.1} parent=95 // pred_check_branch
          %1365 = sbr.rel (%p1363) target = $region108
        $region107: #{tpu_custom_call.1} parent=95 // pred_region
          %s1366 = sand.u32 %s38, 1
          %s1367 = scalar_lea.sflag [#allocation14], %s1366
          %s1368 = sand.u32 %s318, 1
          %s1369 = smul.addr %s1368, 8
          %s1370 = scalar_lea.vmem [#allocation15], %s1369
          %1371 = dma.done %s1367, 128
        $region108: #{tpu_custom_call.1} parent=95 // pred_fallthru
          _
      $region96: #{tpu_custom_call.1} parent=5 // pred_fallthru
        _
    $region6: #{tpu_custom_call.1} parent=1 // loop_footer
      %s36 = sadd.s32 1, %s32
    $region7: #{tpu_custom_call.1} parent=1 // loop_footer_branch
      %31 = sbr.rel target = $region3
    $region8: #{tpu_custom_call.1} parent=1 // loop_exit
      _
    %1372 = vsyncpa [#allocation4], 1
    %s1373 = scalar_lea.sflag [#allocation4], 1
    %1374 = vsyncpa %s1373, 1
    %1375 = vsyncpa [#allocation7], 1
    %s1376 = scalar_lea.sflag [#allocation7], 1
    %1377 = vsyncpa %s1376, 1
    %1378 = vsyncpa [#allocation10], 1
    %1379 = vsyncpa [#allocation5], 1
    %s1380 = scalar_lea.sflag [#allocation5], 1
    %1381 = vsyncpa %s1380, 1
    %1382 = vsyncpa [#allocation14], 1
    %s1383 = scalar_lea.sflag [#allocation14], 1
    %1384 = vsyncpa %s1383, 1

</llo_original>
